<compile_context>
chip_gen: v7x
topology: tpu7x:2x2x1
jax: 0.10.0
libtpu: 0.0.40
codegen_flags: <defaults>
</compile_context>

<pallas_src>
import jax
import jax.numpy as jnp
from jax.experimental import pallas as pl
from jax.experimental.pallas import tpu as pltpu

ACT_DTYPE = jnp.bfloat16   # activation / weight dtype; accumulation stays f32


def _pick_cout_tile(cout):
    """Largest Cout tile that keeps the stored last dim lane-dense (multiple of
    128) or equal to the full channel count (BlockSpec requirement)."""
    if cout % 256 == 0:
        return 256
    if cout % 128 == 0:
        return 128
    return cout


# ----------------------------------------------------------------------------
# Kernel 1: ConvTranspose2d with kernel (2,2), stride (2,2).
# One matmul (H*W, Cin) @ (Cin, 4*Cout); the four taps (t = 2*kh + kw) are
# de-interleaved to the (2H, 2W, Cout) layout entirely inside VMEM so the
# kernel output is directly the upsampled NHWC image (no XLA shuffle after).
# ----------------------------------------------------------------------------
def _convtranspose2x2_kernel(x_ref, w_ref, b_ref, o_ref):
    # x_ref: (1, H, W, Cin)  w_ref: (Cin, 4*Cout)  b_ref: (1, 4*Cout)
    # o_ref: (1, 2H, 2W, Cout)
    _, H, W, Cin = x_ref.shape
    Cout = o_ref.shape[3]
    x = x_ref[0].reshape(H * W, Cin)
    y = jnp.dot(x, w_ref[...], preferred_element_type=jnp.float32) + b_ref[...]
    y = y.astype(o_ref.dtype)

    # Channel-slice the 4 taps (lane slices), keep the lane dim = Cout constant
    # through all the layout ops below (only leading/sublane dims regroup).
    taps = [y[:, t * Cout:(t + 1) * Cout].reshape(H, W, Cout) for t in range(4)]
    # Interleave kw along W:   out[2h+kh, 2w+kw] = tap(kh, kw)[h, w]
    row_even = jnp.stack([taps[0], taps[1]], axis=2).reshape(H, 2 * W, Cout)  # kh=0
    row_odd = jnp.stack([taps[2], taps[3]], axis=2).reshape(H, 2 * W, Cout)   # kh=1
    # Interleave kh along H.
    o_ref[0] = jnp.stack([row_even, row_odd], axis=1).reshape(2 * H, 2 * W, Cout)


def conv_transpose_2x2_s2(x_nhwc, w_torch, b):
    """x_nhwc: (N,H,W,Cin) bf16. w_torch: (Cin, Cout, 2, 2) (PyTorch ConvTranspose2d)."""
    N, H, W, Cin = x_nhwc.shape
    Cout = w_torch.shape[1]
    # (Cin, Cout, kh, kw) -> (Cin, kh, kw, Cout) -> (Cin, 4*Cout); col = (2*kh+kw)*Cout + co
    w_r = jnp.transpose(w_torch, (0, 2, 3, 1)).reshape(Cin, 4 * Cout).astype(ACT_DTYPE)
    b_r = jnp.tile(b, 4).reshape(1, 4 * Cout).astype(jnp.float32)

    return pl.pallas_call(
        _convtranspose2x2_kernel,
        out_shape=jax.ShapeDtypeStruct((N, 2 * H, 2 * W, Cout), ACT_DTYPE),
        grid=(N,),
        in_specs=[
            pl.BlockSpec((1, H, W, Cin), lambda n: (n, 0, 0, 0)),
            pl.BlockSpec((Cin, 4 * Cout), lambda n: (0, 0)),
            pl.BlockSpec((1, 4 * Cout), lambda n: (0, 0)),
        ],
        out_specs=pl.BlockSpec((1, 2 * H, 2 * W, Cout), lambda n: (n, 0, 0, 0)),
        compiler_params=pltpu.CompilerParams(dimension_semantics=("parallel",)),
    )(x_nhwc, w_r, b_r)


# ----------------------------------------------------------------------------
# 3x3 conv building block (pad=1), used by both fused conv kernels.
# The halo is built in VMEM (zero rows/cols via concatenate); the kw taps are
# folded into the matmul K axis -> 3 matmuls with K = 3*Cin per input tensor.
# ----------------------------------------------------------------------------
def _conv3x3_accum(x, w3, acc):
    # x:   (H, W, Cin)           activation tile (unpadded)
    # w3:  (3, 3*Cin, Cout_t)    layout [kh, kw*Cin + ci, co]  (BN scale folded in)
    # acc: (H*W, Cout_t) float32 accumulator
    H, W, Cin = x.shape
    zrow = jnp.zeros((1, W, Cin), x.dtype)
    xp = jnp.concatenate([zrow, x, zrow], axis=0)            # (H+2, W,   Cin)
    zcol = jnp.zeros((H + 2, 1, Cin), x.dtype)
    xp = jnp.concatenate([zcol, xp, zcol], axis=1)           # (H+2, W+2, Cin)
    for kh in range(3):
        rows = xp[kh:kh + H, :, :]                           # (H, W+2, Cin)
        slab = jnp.concatenate(
            [rows[:, kw:kw + W, :] for kw in range(3)], axis=-1)   # (H, W, 3*Cin)
        acc = acc + jnp.dot(slab.reshape(H * W, 3 * Cin), w3[kh],
                            preferred_element_type=jnp.float32)
    return acc


def _conv1_fused_kernel(x2_ref, x1_ref, w2_ref, w1_ref, shift_ref, o_ref):
    # Fused: Conv3x3(cat([x2, x1], channel)) + folded-BN + ReLU.
    # x2_ref: (1, H, W, C2)  x1_ref: (1, H, W, C1)
    # w2_ref: (3, 3*C2, Ct)  w1_ref: (3, 3*C1, Ct)  shift_ref: (1, Ct)
    # o_ref:  (1, H, W, Ct)
    _, H, W, _ = x2_ref.shape
    ct = o_ref.shape[3]
    acc = jnp.zeros((H * W, ct), jnp.float32)
    acc = _conv3x3_accum(x2_ref[0], w2_ref[...], acc)
    acc = _conv3x3_accum(x1_ref[0], w1_ref[...], acc)
    y = jnp.maximum(acc + shift_ref[...], 0.0)
    o_ref[0] = y.reshape(H, W, ct).astype(o_ref.dtype)


def _conv3x3_bn_relu_kernel(x_ref, w_ref, shift_ref, o_ref):
    # Conv3x3 + folded-BN + ReLU, single input.
    _, H, W, _ = x_ref.shape
    ct = o_ref.shape[3]
    acc = jnp.zeros((H * W, ct), jnp.float32)
    acc = _conv3x3_accum(x_ref[0], w_ref[...], acc)
    y = jnp.maximum(acc + shift_ref[...], 0.0)
    o_ref[0] = y.reshape(H, W, ct).astype(o_ref.dtype)


def _fold_bn(w_torch, b, gamma, beta, rmean, rvar, eps=1e-5):
    """Fold BN(inference) into the conv: conv(x, w*s) + shift == BN(conv(x, w) + b)."""
    scale = gamma / jnp.sqrt(rvar + eps)                     # (Cout,)
    shift = (b - rmean) * scale + beta                       # (Cout,)
    # (Cout, Cin, kh, kw) -> (kh, kw, Cin, Cout), scale per output channel.
    w = jnp.transpose(w_torch, (2, 3, 1, 0)) * scale
    return w, shift


def _pack_w(w_khkwcico):
    # (3, 3, Cin, Cout) -> (3, 3*Cin, Cout) matching the in-kernel slab layout.
    kh, kw, cin, cout = w_khkwcico.shape
    return w_khkwcico.reshape(kh, kw * cin, cout).astype(ACT_DTYPE)


def conv1_fused(x2, x1, w_torch, b, gamma, beta, rmean, rvar, eps=1e-5):
    """First ConvBlock conv. Consumes the skip (x2) and upsampled (x1) tensors
    separately, fusing torch.cat([x2, x1], dim=1) via a weight split along Cin."""
    assert x1.shape[:3] == x2.shape[:3], (x1.shape, x2.shape)
    N, H, W, C2 = x2.shape
    C1 = x1.shape[3]
    Cout = w_torch.shape[0]

    w, shift = _fold_bn(w_torch, b, gamma, beta, rmean, rvar, eps)
    w2 = _pack_w(w[:, :, :C2, :])                            # skip-connection part
    w1 = _pack_w(w[:, :, C2:, :])                            # upsampled part
    shift = shift.reshape(1, Cout).astype(jnp.float32)

    ct = _pick_cout_tile(Cout)
    return pl.pallas_call(
        _conv1_fused_kernel,
        out_shape=jax.ShapeDtypeStruct((N, H, W, Cout), ACT_DTYPE),
        grid=(N, Cout // ct),
        in_specs=[
            # input blocks are constant across the Cout axis -> fetched once per image
            pl.BlockSpec((1, H, W, C2), lambda n, j: (n, 0, 0, 0)),
            pl.BlockSpec((1, H, W, C1), lambda n, j: (n, 0, 0, 0)),
            pl.BlockSpec((3, 3 * C2, ct), lambda n, j: (0, 0, j)),
            pl.BlockSpec((3, 3 * C1, ct), lambda n, j: (0, 0, j)),
            pl.BlockSpec((1, ct), lambda n, j: (0, j)),
        ],
        out_specs=pl.BlockSpec((1, H, W, ct), lambda n, j: (n, 0, 0, j)),
        compiler_params=pltpu.CompilerParams(
            dimension_semantics=("parallel", "parallel")),
    )(x2, x1, w2, w1, shift)


def conv3x3_bn_relu(x, w_torch, b, gamma, beta, rmean, rvar, eps=1e-5,
                    out_dtype=None):
    """Second ConvBlock conv: Conv3x3 + folded-BN + ReLU."""
    N, H, W, Cin = x.shape
    Cout = w_torch.shape[0]
    w, shift = _fold_bn(w_torch, b, gamma, beta, rmean, rvar, eps)
    w_p = _pack_w(w)
    shift = shift.reshape(1, Cout).astype(jnp.float32)
    ct = _pick_cout_tile(Cout)
    out_dtype = ACT_DTYPE if out_dtype is None else out_dtype

    return pl.pallas_call(
        _conv3x3_bn_relu_kernel,
        out_shape=jax.ShapeDtypeStruct((N, H, W, Cout), out_dtype),
        grid=(N, Cout // ct),
        in_specs=[
            pl.BlockSpec((1, H, W, Cin), lambda n, j: (n, 0, 0, 0)),
            pl.BlockSpec((3, 3 * Cin, ct), lambda n, j: (0, 0, j)),
            pl.BlockSpec((1, ct), lambda n, j: (0, j)),
        ],
        out_specs=pl.BlockSpec((1, H, W, ct), lambda n, j: (n, 0, 0, j)),
        compiler_params=pltpu.CompilerParams(
            dimension_semantics=("parallel", "parallel")),
    )(x, w_p, shift)


# ----------------------------------------------------------------------------
# UpsamplingBlock forward (bilinear=False path, as in the module default).
# ----------------------------------------------------------------------------
def _pad_or_crop_hw(x, target_h, target_w):
    """Replicates F.pad(x1, [l, r, t, b]) incl. negative pads (crops).
    Skipped entirely (no HBM copy) when the sizes already match."""
    N, H, W, C = x.shape
    if H == target_h and W == target_w:
        return x
    dh, dw = target_h - H, target_w - W
    top, left = dh // 2, dw // 2
    bottom, right = target_h - (H + top), target_w - (W + left)
    x = x[:, max(0, -top):H - max(0, -bottom),
          max(0, -left):W - max(0, -right), :]
    return jnp.pad(x, ((0, 0),
                       (max(0, top), max(0, bottom)),
                       (max(0, left), max(0, right)),
                       (0, 0)))


def upsampling_block_forward(x1_nchw, x2_nchw, params):
    # NCHW (PyTorch) -> NHWC (channels on the 128-lane axis) at the boundary.
    x1 = jnp.transpose(x1_nchw, (0, 2, 3, 1)).astype(ACT_DTYPE)
    x2 = jnp.transpose(x2_nchw, (0, 2, 3, 1)).astype(ACT_DTYPE)

    # self.up = ConvTranspose2d(in//2, in//2, (2,2), stride=(2,2))
    x1 = conv_transpose_2x2_s2(x1, params["up_w"], params["up_b"])

    # F.pad to x2's spatial dims (no-op in the standard even-size UNet case).
    x1 = _pad_or_crop_hw(x1, x2.shape[1], x2.shape[2])

    # ConvBlock: (Conv3x3 -> BN -> Dropout(identity) -> ReLU) x 2.
    # torch.cat([x2, x1], dim=1) is fused into conv #1 via the weight split.
    h = conv1_fused(x2, x1, params["c1_w"], params["c1_b"],
                    params["bn1_g"], params["bn1_b"],
                    params["bn1_m"], params["bn1_v"])
    out = conv3x3_bn_relu(h, params["c2_w"], params["c2_b"],
                          params["bn2_g"], params["bn2_b"],
                          params["bn2_m"], params["bn2_v"],
                          out_dtype=jnp.float32)

    return jnp.transpose(out, (0, 3, 1, 2))  # back to NCHW, f32


def init_params(key, in_channels, out_channels):
    c_half = in_channels // 2
    ks = jax.random.split(key, 12)
    return {
        # ConvTranspose2d(in//2, in//2, 2, 2): weight (Cin, Cout, 2, 2)
        "up_w": 0.1 * jax.random.normal(ks[0], (c_half, c_half, 2, 2), jnp.float32),
        "up_b": 0.1 * jax.random.normal(ks[1], (c_half,), jnp.float32),
        # Conv2d(in, out, 3, pad=1): weight (Cout, Cin, 3, 3)
        "c1_w": 0.1 * jax.random.normal(ks[2], (out_channels, in_channels, 3, 3), jnp.float32),
        "c1_b": 0.1 * jax.random.normal(ks[3], (out_channels,), jnp.float32),
        "bn1_g": 1.0 + 0.1 * jax.random.normal(ks[4], (out_channels,), jnp.float32),
        "bn1_b": 0.1 * jax.random.normal(ks[5], (out_channels,), jnp.float32),
        "bn1_m": 0.1 * jax.random.normal(ks[6], (out_channels,), jnp.float32),
        "bn1_v": 0.5 + jnp.abs(0.5 * jax.random.normal(ks[7], (out_channels,), jnp.float32)),
        # Conv2d(out, out, 3, pad=1)
        "c2_w": 0.1 * jax.random.normal(ks[8], (out_channels, out_channels, 3, 3), jnp.float32),
        "c2_b": 0.1 * jax.random.normal(ks[9], (out_channels,), jnp.float32),
        "bn2_g": 1.0 + 0.1 * jax.random.normal(ks[10], (out_channels,), jnp.float32),
        "bn2_b": 0.1 * jax.random.normal(ks[11], (out_channels,), jnp.float32),
        "bn2_m": jnp.zeros((out_channels,), jnp.float32),
        "bn2_v": jnp.ones((out_channels,), jnp.float32),
    }


if __name__ == "__main__":
    key = jax.random.PRNGKey(0)
    k_x1, k_x2, k_p = jax.random.split(key, 3)

    in_channels, out_channels = 8, 8
    # x1: tensor to upsample (in_channels//2 channels, half spatial resolution)
    x1 = jax.random.normal(k_x1, (2, in_channels // 2, 8, 8), jnp.float32)
    # x2: skip connection (in_channels//2 channels, full spatial resolution)
    x2 = jax.random.normal(k_x2, (2, in_channels // 2, 16, 16), jnp.float32)

    params = init_params(k_p, in_channels, out_channels)

    out = upsampling_block_forward(x1, x2, params)
    out = jax.block_until_ready(out)
    assert out.shape == (2, out_channels, 16, 16), out.shape
    print("KERNEL_OK")
</pallas_src>

<mosaic_0001>
module attributes {stable_mosaic.version = 11 : i64} {
  func.func @_convtranspose2x2_kernel(%arg0: i32, %arg1: memref<1x8x8x4xbf16, #tpu.memory_space<vmem>>, %arg2: memref<4x16xbf16, #tpu.memory_space<vmem>>, %arg3: memref<1x16xf32, #tpu.memory_space<vmem>>, %arg4: memref<1x16x16x4xbf16, #tpu.memory_space<vmem>>) attributes {dimension_semantics = [#tpu.dimension_semantics<parallel>], iteration_bounds = array<i64: 2>, scalar_prefetch = 0 : i64, scratch_operands = 0 : i64, tpu.core_type = #tpu.core_type<tc>, window_params = [{transform_indices = @transform_0, window_bounds = array<i64: 1, 8, 8, 4>}, {pipeline_mode = #tpu.pipeline_mode<synchronous>, transform_indices = @transform_1, window_bounds = array<i64: 4, 16>}, {pipeline_mode = #tpu.pipeline_mode<synchronous>, transform_indices = @transform_2, window_bounds = array<i64: 1, 16>}, {transform_indices = @transform_3, window_bounds = array<i64: 1, 16, 16, 4>}]} {
    %c0 = arith.constant 0 : index
    %c0_0 = arith.constant 0 : index
    %c0_1 = arith.constant 0 : index
    %c0_2 = arith.constant 0 : index
    %0 = vector.load %arg1[%c0, %c0_0, %c0_1, %c0_2] : memref<1x8x8x4xbf16, #tpu.memory_space<vmem>>, vector<1x8x8x4xbf16>
    %1 = vector.shape_cast %0 : vector<1x8x8x4xbf16> to vector<8x8x4xbf16>
    %2 = vector.shape_cast %1 : vector<8x8x4xbf16> to vector<64x4xbf16>
    %c0_3 = arith.constant 0 : index
    %c0_4 = arith.constant 0 : index
    %3 = vector.load %arg2[%c0_3, %c0_4] : memref<4x16xbf16, #tpu.memory_space<vmem>>, vector<4x16xbf16>
    %cst = arith.constant dense<0.000000e+00> : vector<64x16xf32>
    %4 = tpu.matmul %2, %3, %cst {dimension_numbers = #tpu.dot_dimension_numbers<[1], [0], [0], [1], [0, 0, 1, 1], [], []>} : vector<64x4xbf16>, vector<4x16xbf16>, vector<64x16xf32> -> vector<64x16xf32>
    %c0_5 = arith.constant 0 : index
    %c0_6 = arith.constant 0 : index
    %5 = vector.load %arg3[%c0_5, %c0_6] : memref<1x16xf32, #tpu.memory_space<vmem>>, vector<1x16xf32>
    %6 = vector.broadcast %5 : vector<1x16xf32> to vector<64x16xf32>
    %7 = arith.addf %4, %6 : vector<64x16xf32>
    %8 = arith.truncf %7 : vector<64x16xf32> to vector<64x16xbf16>
    %9 = vector.extract_strided_slice %8 {offsets = [0, 0], sizes = [64, 4], strides = [1, 1]} : vector<64x16xbf16> to vector<64x4xbf16>
    %10 = vector.shape_cast %9 : vector<64x4xbf16> to vector<8x8x4xbf16>
    %11 = vector.extract_strided_slice %8 {offsets = [0, 4], sizes = [64, 4], strides = [1, 1]} : vector<64x16xbf16> to vector<64x4xbf16>
    %12 = vector.shape_cast %11 : vector<64x4xbf16> to vector<8x8x4xbf16>
    %13 = vector.extract_strided_slice %8 {offsets = [0, 8], sizes = [64, 4], strides = [1, 1]} : vector<64x16xbf16> to vector<64x4xbf16>
    %14 = vector.shape_cast %13 : vector<64x4xbf16> to vector<8x8x4xbf16>
    %15 = vector.extract_strided_slice %8 {offsets = [0, 12], sizes = [64, 4], strides = [1, 1]} : vector<64x16xbf16> to vector<64x4xbf16>
    %16 = vector.shape_cast %15 : vector<64x4xbf16> to vector<8x8x4xbf16>
    %17 = vector.shape_cast %10 : vector<8x8x4xbf16> to vector<8x8x1x4xbf16>
    %18 = vector.shape_cast %12 : vector<8x8x4xbf16> to vector<8x8x1x4xbf16>
    %19 = tpu.concatenate %17, %18 in 2 : vector<8x8x1x4xbf16>, vector<8x8x1x4xbf16> -> vector<8x8x2x4xbf16>
    %20 = vector.shape_cast %19 : vector<8x8x2x4xbf16> to vector<8x16x4xbf16>
    %21 = vector.shape_cast %14 : vector<8x8x4xbf16> to vector<8x8x1x4xbf16>
    %22 = vector.shape_cast %16 : vector<8x8x4xbf16> to vector<8x8x1x4xbf16>
    %23 = tpu.concatenate %21, %22 in 2 : vector<8x8x1x4xbf16>, vector<8x8x1x4xbf16> -> vector<8x8x2x4xbf16>
    %24 = vector.shape_cast %23 : vector<8x8x2x4xbf16> to vector<8x16x4xbf16>
    %25 = vector.shape_cast %20 : vector<8x16x4xbf16> to vector<8x1x16x4xbf16>
    %26 = vector.shape_cast %24 : vector<8x16x4xbf16> to vector<8x1x16x4xbf16>
    %27 = tpu.concatenate %25, %26 in 1 : vector<8x1x16x4xbf16>, vector<8x1x16x4xbf16> -> vector<8x2x16x4xbf16>
    %28 = vector.shape_cast %27 : vector<8x2x16x4xbf16> to vector<16x16x4xbf16>
    %c0_7 = arith.constant 0 : index
    %c0_8 = arith.constant 0 : index
    %c0_9 = arith.constant 0 : index
    %c0_10 = arith.constant 0 : index
    %29 = vector.load %arg4[%c0_7, %c0_8, %c0_9, %c0_10] : memref<1x16x16x4xbf16, #tpu.memory_space<vmem>>, vector<1x16x16x4xbf16>
    %30 = vector.shape_cast %29 : vector<1x16x16x4xbf16> to vector<16x16x4xbf16>
    %31 = vector.shape_cast %28 : vector<16x16x4xbf16> to vector<1x16x16x4xbf16>
    tpu.vector_store %arg4[%c0_7, %c0_8, %c0_9, %c0_10], %31 {strides = array<i32>} : memref<1x16x16x4xbf16, #tpu.memory_space<vmem>>, vector<1x16x16x4xbf16>,
    return
  }
  func.func @transform_0(%arg0: i32) -> (i32, i32, i32, i32) {
    %c0_i32 = arith.constant 0 : i32
    %c0_i32_0 = arith.constant 0 : i32
    %c0_i32_1 = arith.constant 0 : i32
    %c0_i32_2 = arith.constant 0 : i32
    return %arg0, %c0_i32, %c0_i32_0, %c0_i32_1 : i32, i32, i32, i32
  }
  func.func @transform_1(%arg0: i32) -> (i32, i32) {
    %c0_i32 = arith.constant 0 : i32
    %c0_i32_0 = arith.constant 0 : i32
    %c0_i32_1 = arith.constant 0 : i32
    return %c0_i32, %c0_i32_0 : i32, i32
  }
  func.func @transform_2(%arg0: i32) -> (i32, i32) {
    %c0_i32 = arith.constant 0 : i32
    %c0_i32_0 = arith.constant 0 : i32
    %c0_i32_1 = arith.constant 0 : i32
    return %c0_i32, %c0_i32_0 : i32, i32
  }
  func.func @transform_3(%arg0: i32) -> (i32, i32, i32, i32) {
    %c0_i32 = arith.constant 0 : i32
    %c0_i32_0 = arith.constant 0 : i32
    %c0_i32_1 = arith.constant 0 : i32
    %c0_i32_2 = arith.constant 0 : i32
    return %arg0, %c0_i32, %c0_i32_0, %c0_i32_1 : i32, i32, i32, i32
  }
}

</mosaic_0001>

<llo_original>
// kernel: tpu_custom_call.1
$region0: #{tpu_custom_call.1}
  #allocation0 [shape = 'u32[]', space=smem, size = 0x4, offset = 0x4, fixed_abs, tag = 'smem constant byte address 0x4 - core index']
  #allocation1 [shape = 'u32[144,128]{1,0:T(1,128)}', space=vmem, size = 0x12000, scoped, tag = 'internal scratch']
  %s0 = inlined_call_operand.vmem [shape: bf16[2,8,8,4], index: 0, kind: input, shape index: {}]
  %s1 = inlined_call_operand.vmem [shape: bf16[4,16], index: 1, kind: input, shape index: {}]
  %s2 = inlined_call_operand.vmem [shape: f32[1,16], index: 2, kind: input, shape index: {}]
  %s3 = inlined_call_operand.vmem [shape: bf16[2,16,16,4], index: 3, kind: output, shape index: {}]
  %s4 = sld [smem:[#allocation0]]
  $region45: #{tpu_custom_call.1} parent=0
    _
  %s6 = ssub.s32 1, %s4
  %s7 = scalar_select 0, %s6, %s4
  loop: start=0, step=1, limit=4
  $region2: #{tpu_custom_call.1} parent=0 // loop_pre_header
    _
  $region3: #{tpu_custom_call.1} parent=0 // loop_header
    %s9 = sphi 0, %s13
    %p10 = scmp.ge.s32.totalorder %s9, 4
    %s19 = sphi 0, %s21
    %s22 = sphi 0, %s19
    %s23 = sphi 0, %s22
    %s39 = sphi 0, %s23
    %s43 = sphi 0, %s43
    %s45 = sphi 0, %s43
    %s46 = sphi 0, %s45
    %s60 = sphi 0, %s46
    %s64 = sphi 0, %s64
    %s66 = sphi 0, %s64
    %s67 = sphi 0, %s66
    %s81 = sphi 0, %s67
    %s87 = sphi 0, %s89
    %s90 = sphi 0, %s87
    %s91 = sphi 0, %s90
    %s107 = sphi 0, %s91
  $region4: #{tpu_custom_call.1} parent=0 // loop_header_branch
    %12 = sbr.rel (%p10) target = $region8
  $region5: #{tpu_custom_call.1} parent=0 // loop_body
    %s14 = ssub.s32 %s9, 1
    %s15 = ssub.s32 %s9, 2
    %s16 = sadd.s32 %s9, 1
    %s17 = ssub.s32 %s9, %s16
    %p18 = scmp.eq.s32.totalorder %s17, 0
    %s20 = sadd.s32 %s19, 1
    %s21 = scalar_select %p18, %s19, %s20
    %p24 = pneg %p18
    %p25 = scmp.eq.s32.totalorder %s9, 1
    %p26 = por %p24, %p25
    %p27 = scmp.ne.s32.totalorder %s19, %s22
    %p28 = scmp.eq.s32.totalorder %s9, 0
    %p29 = por %p27, %p28
    %p30 = scmp.ne.s32.totalorder %s19, %s22
    %p31 = scmp.eq.s32.totalorder %s14, 1
    %p32 = por %p30, %p31
    %p33 = scmp.ne.s32.totalorder %s22, %s23
    %p34 = scmp.eq.s32.totalorder %s14, 0
    %p35 = por %p33, %p34
    %p36 = scmp.ne.s32.totalorder %s22, %s23
    %p37 = scmp.eq.s32.totalorder %s15, 1
    %p38 = por %p36, %p37
    %p40 = scmp.ne.s32.totalorder %s23, %s39
    %p41 = scmp.eq.s32.totalorder %s15, 0
    %p42 = por %p40, %p41
    %s44 = sadd.s32 %s43, 1
    %p47 = scmp.eq.s32.totalorder %s9, 1
    %p48 = scmp.ne.s32.totalorder %s43, %s45
    %p49 = scmp.eq.s32.totalorder %s9, 0
    %p50 = por %p48, %p49
    %p51 = scmp.ne.s32.totalorder %s43, %s45
    %p52 = scmp.eq.s32.totalorder %s14, 1
    %p53 = por %p51, %p52
    %p54 = scmp.ne.s32.totalorder %s45, %s46
    %p55 = scmp.eq.s32.totalorder %s14, 0
    %p56 = por %p54, %p55
    %p57 = scmp.ne.s32.totalorder %s45, %s46
    %p58 = scmp.eq.s32.totalorder %s15, 1
    %p59 = por %p57, %p58
    %p61 = scmp.ne.s32.totalorder %s46, %s60
    %p62 = scmp.eq.s32.totalorder %s15, 0
    %p63 = por %p61, %p62
    %s65 = sadd.s32 %s64, 1
    %p68 = scmp.eq.s32.totalorder %s9, 1
    %p69 = scmp.ne.s32.totalorder %s64, %s66
    %p70 = scmp.eq.s32.totalorder %s9, 0
    %p71 = por %p69, %p70
    %p72 = scmp.ne.s32.totalorder %s64, %s66
    %p73 = scmp.eq.s32.totalorder %s14, 1
    %p74 = por %p72, %p73
    %p75 = scmp.ne.s32.totalorder %s66, %s67
    %p76 = scmp.eq.s32.totalorder %s14, 0
    %p77 = por %p75, %p76
    %p78 = scmp.ne.s32.totalorder %s66, %s67
    %p79 = scmp.eq.s32.totalorder %s15, 1
    %p80 = por %p78, %p79
    %p82 = scmp.ne.s32.totalorder %s67, %s81
    %p83 = scmp.eq.s32.totalorder %s15, 0
    %p84 = por %p82, %p83
    %s85 = ssub.s32 %s9, %s16
    %p86 = scmp.eq.s32.totalorder %s85, 0
    %s88 = sadd.s32 %s87, 1
    %s89 = scalar_select %p86, %s87, %s88
    %p92 = pneg %p86
    %p93 = scmp.eq.s32.totalorder %s9, 1
    %p94 = por %p92, %p93
    %p95 = scmp.ne.s32.totalorder %s87, %s90
    %p96 = scmp.eq.s32.totalorder %s9, 0
    %p97 = por %p95, %p96
    %p98 = scmp.ne.s32.totalorder %s87, %s90
    %p99 = scmp.eq.s32.totalorder %s14, 1
    %p100 = por %p98, %p99
    %p101 = scmp.ne.s32.totalorder %s90, %s91
    %p102 = scmp.eq.s32.totalorder %s14, 0
    %p103 = por %p101, %p102
    %p104 = scmp.ne.s32.totalorder %s90, %s91
    %p105 = scmp.eq.s32.totalorder %s15, 1
    %p106 = por %p104, %p105
    %p108 = scmp.ne.s32.totalorder %s91, %s107
    %p109 = scmp.eq.s32.totalorder %s15, 0
    %p110 = por %p108, %p109
    %p111 = scmp.le.s32.totalorder 1, %s9
    %p112 = scmp.lt.s32.totalorder %s9, 3
    %p113 = pnand %p111, %p112
    %p114 = pneg %p113
    // Predicated region
    $region9: #{tpu_custom_call.1} parent=5 // pred_check
      _
    $region10: #{tpu_custom_call.1} parent=5 // pred_check_branch
      %116 = sbr.rel (%p113) target = $region12
    $region11: #{tpu_custom_call.1} parent=5 // pred_region
      %s117 = ssub.s32 %s9, 1
      // Predicated region
      $region13: #{tpu_custom_call.1} parent=11 // pred_check
        %p118 = pneg %p56
      $region14: #{tpu_custom_call.1} parent=11 // pred_check_branch
        %120 = sbr.rel (%p118) target = $region16
      $region15: #{tpu_custom_call.1} parent=11 // pred_region
        _
      $region16: #{tpu_custom_call.1} parent=11 // pred_fallthru
        _
      // Predicated region
      $region17: #{tpu_custom_call.1} parent=11 // pred_check
        %p121 = pneg %p77
      $region18: #{tpu_custom_call.1} parent=11 // pred_check_branch
        %123 = sbr.rel (%p121) target = $region20
      $region19: #{tpu_custom_call.1} parent=11 // pred_region
        _
      $region20: #{tpu_custom_call.1} parent=11 // pred_fallthru
        _
    $region12: #{tpu_custom_call.1} parent=5 // pred_fallthru
      _
    %p124 = scmp.lt.s32.totalorder %s9, 2
    // Predicated region
    $region21: #{tpu_custom_call.1} parent=5 // pred_check
      %p125 = pneg %p124
    $region22: #{tpu_custom_call.1} parent=5 // pred_check_branch
      %127 = sbr.rel (%p125) target = $region24
    $region23: #{tpu_custom_call.1} parent=5 // pred_region
      // Predicated region
      $region25: #{tpu_custom_call.1} parent=23 // pred_check
        %p128 = pneg %p29
      $region26: #{tpu_custom_call.1} parent=23 // pred_check_branch
        %130 = sbr.rel (%p128) target = $region28
      $region27: #{tpu_custom_call.1} parent=23 // pred_region
        %p131 = scmp.lt.s32.totalorder %s9, 1
        %s132 = scalar_select %p131, %s9, 1
        %s133 = smul.addr %s132, 8
        %s134 = smul.addr %s133, 4
        %s135 = scalar_lea.vmem %s0, %s134
      $region28: #{tpu_custom_call.1} parent=23 // pred_fallthru
        _
    $region24: #{tpu_custom_call.1} parent=5 // pred_fallthru
      _
    %p136 = scmp.le.s32.totalorder 1, %s9
    %p137 = scmp.lt.s32.totalorder %s9, 3
    %p138 = pnand %p136, %p137
    %p139 = pneg %p138
    // Predicated region
    $region29: #{tpu_custom_call.1} parent=5 // pred_check
      _
    $region30: #{tpu_custom_call.1} parent=5 // pred_check_branch
      %141 = sbr.rel (%p138) target = $region32
    $region31: #{tpu_custom_call.1} parent=5 // pred_region
      %s142 = ssub.s32 %s9, 1
      %p143 = scmp.lt.s32.totalorder %s14, 1
      %s144 = scalar_select %p143, %s14, 1
      %s145 = smul.addr %s144, 8
      %s146 = smul.addr %s145, 4
      %s147 = scalar_lea.vmem %s0, %s146
      %p148 = pneg %p35
      %p149 = pneg %p32
      %p150 = pneg %p56
      %p151 = pneg %p53
      %p152 = pneg %p77
      %p153 = pneg %p74
      %p154 = pneg %p103
      %p155 = pneg %p100
      %p156 = scmp.lt.s32.totalorder %s14, 1
      %s157 = scalar_select %p156, %s14, 1
      %s158 = smul.addr %s157, 32
      %s159 = smul.addr %s158, 4
      %s160 = scalar_lea.vmem %s3, %s159
      %p161 = scmp.lt.s32.totalorder %s14, 1
      %s162 = scalar_select %p161, %s14, 1
      %s163 = smul.addr %s162, 8
      %s164 = smul.addr %s163, 4
      %s165 = scalar_lea.vmem %s0, %s164
      %p166 = scmp.lt.s32.totalorder %s14, 1
      %s167 = scalar_select %p166, %s14, 1
      %s168 = smul.addr %s167, 32
      %s169 = smul.addr %s168, 4
      %s170 = scalar_lea.vmem %s3, %s169
      %v172 = vld [vmem:[%s165] sm:$0xf]
      %v173 = vld [vmem:[%s165 + $0x4] sm:$0xf]
      %v174 = vld [vmem:[%s165 + $0x8] sm:$0xf]
      %v175 = vld [vmem:[%s165 + $0xc] sm:$0xf]
      %v176 = vld [vmem:[%s165 + $0x10] sm:$0xf]
      %v177 = vld [vmem:[%s165 + $0x14] sm:$0xf]
      %v178 = vld [vmem:[%s165 + $0x18] sm:$0xf]
      %v179 = vld [vmem:[%s165 + $0x1c] sm:$0xf]
      %v180 = vld [vmem:[%s1] sm:$0x3]
      %v181 = vld [vmem:[%s2] sm:$0x1]
      %v183 = vlaneseq
      %v184 = vshrl.u32 %v183, 7
      %v185 = vsub.s32 0, %v184
      %v186 = vrot.slane %v181, %v185
      %v196 = vunpack.c.l.b16 %v172
      %v197 = vunpack.c.l.b16 %v173
      %v198 = vunpack.c.l.b16 %v174
      %v199 = vunpack.c.l.b16 %v175
      %v200 = vunpack.c.l.b16 %v176
      %v201 = vunpack.c.l.b16 %v177
      %v202 = vunpack.c.l.b16 %v178
      %v203 = vunpack.c.l.b16 %v179
      %v204 = vpack.c.b16 %v197, %v196
      %v205 = vpack.c.b16 %v199, %v198
      %v206 = vpack.c.b16 %v201, %v200
      %v207 = vpack.c.b16 %v203, %v202
      %vm208 = vcmask 31744
      %v210 = vsel %vm208, %v204, 0
      %v213 = vsel %vm208, %v205, 0
      %v216 = vsel %vm208, %v206, 0
      %v219 = vsel %vm208, %v207, 0
      %vm221 = vcmask 1041408
      %v223 = vsel %vm221, %v180, 0
      %225 = vmatprep.subr.bf16.mxu0 0
      %226 = vmatpush1.bf16.msra.mxu0 %v223
      %227 = vmatprep.subr.bf16.mxu0 0
      %228 = vmatpush1.bf16.msra.mxu0 0
      %229 = vmatprep.subr.bf16.mxu0 0
      %230 = vmatpush1.bf16.msra.mxu0 0
      %231 = vmatprep.subr.bf16.mxu0 0
      %232 = vmatpush1.bf16.msra.mxu0 0
      %233 = vmatprep.subr.bf16.mxu0 0
      %234 = vmatpush1.bf16.msra.mxu0 0
      %235 = vmatprep.subr.bf16.mxu0 0
      %236 = vmatpush1.bf16.msra.mxu0 0
      %237 = vmatprep.subr.bf16.mxu0 0
      %238 = vmatpush1.bf16.msra.mxu0 0
      %239 = vmatprep.subr.bf16.mxu0 0
      %240 = vmatpush1.bf16.msra.mxu0 0
      %241 = vmatprep.subr.bf16.mxu0 0
      %242 = vmatpush1.bf16.msra.mxu0 0
      %243 = vmatprep.subr.bf16.mxu0 0
      %244 = vmatpush1.bf16.msra.mxu0 0
      %245 = vmatprep.subr.bf16.mxu0 0
      %246 = vmatpush1.bf16.msra.mxu0 0
      %247 = vmatprep.subr.bf16.mxu0 0
      %248 = vmatpush1.bf16.msra.mxu0 0
      %249 = vmatprep.subr.bf16.mxu0 0
      %250 = vmatpush1.bf16.msra.mxu0 0
      %251 = vmatprep.subr.bf16.mxu0 0
      %252 = vmatpush1.bf16.msra.mxu0 0
      %253 = vmatprep.subr.bf16.mxu0 0
      %254 = vmatpush1.bf16.msra.mxu0 0
      %255 = vmatprep.subr.bf16.mxu0 0
      %256 = vmatpush1.bf16.msra.mxu0 0
      %257 = vmatprep.mubr.bf16.mxu0 0
      %258 = vmatmul.mubr.bf16.gmra.mrb[0].mxu0 %v210
      %v259 = vpop.f32.mrb[0].mxu0
      %v260 = vadd.f32 %v186, %v259
      %v261 = vpop.f32.mrb[0].mxu0
      %v262 = vpop.f32.mrb[0].mxu0
      %v263 = vadd.f32 %v186, %v262
      %v264 = vpop.f32.mrb[0].mxu0
      %265 = vmatprep.mubr.bf16.mxu0 0
      %266 = vmatmul.mubr.bf16.gmra.mrb[0].mxu0 %v213
      %v267 = vpop.f32.mrb[0].mxu0
      %v268 = vadd.f32 %v186, %v267
      %v269 = vpop.f32.mrb[0].mxu0
      %v270 = vpop.f32.mrb[0].mxu0
      %v271 = vadd.f32 %v186, %v270
      %v272 = vpop.f32.mrb[0].mxu0
      %273 = vmatprep.mubr.bf16.mxu0 0
      %274 = vmatmul.mubr.bf16.gmra.mrb[0].mxu0 %v216
      %v275 = vpop.f32.mrb[0].mxu0
      %v276 = vadd.f32 %v186, %v275
      %v277 = vpop.f32.mrb[0].mxu0
      %v278 = vpop.f32.mrb[0].mxu0
      %v279 = vadd.f32 %v186, %v278
      %v280 = vpop.f32.mrb[0].mxu0
      %281 = vmatprep.mubr.bf16.mxu0 0
      %282 = vmatmul.mubr.bf16.gmra.mrb[0].mxu0 %v219
      %v283 = vpop.f32.mrb[0].mxu0
      %v284 = vadd.f32 %v186, %v283
      %v285 = vpop.f32.mrb[0].mxu0
      %v286 = vpop.f32.mrb[0].mxu0
      %v287 = vadd.f32 %v186, %v286
      %v288 = vpop.f32.mrb[0].mxu0
      %289 = vdwg.mxu0
      %v290 = vpack.c.bf16 %v263, %v260
      %v291 = vpack.c.bf16 %v271, %v268
      %v292 = vpack.c.bf16 %v279, %v276
      %v293 = vpack.c.bf16 %v287, %v284
      %v298 = vcombine.high %v290, %v290
      %v300 = vunpack.c.l.s4 1966171168
      %v301 = vunpack.c.0.s8 %v300
      %v302 = vlaneseq
      %v303 = vshrl.u32 %v302, 7
      %v304 = vsub.s32 %v301, %v303
      %v305 = vrot.slane %v290, %v304
      %v307 = vunpack.c.l.s4 1966171168
      %v308 = vunpack.c.0.s8 %v307
      %v309 = vlaneseq
      %v310 = vshrl.u32 %v309, 7
      %v311 = vsub.s32 %v308, %v310
      %v312 = vrot.slane %v298, %v311
      %v313 = vcombine.high %v305, %v305
      %v314 = vcombine.high %v312, %v312
      %v316 = vunpack.c.l.s4 1966171168
      %v317 = vunpack.c.0.s8 %v316
      %v318 = vlaneseq
      %v319 = vshrl.u32 %v318, 7
      %v320 = vsub.s32 %v317, %v319
      %v321 = vrot.slane %v305, %v320
      %v323 = vunpack.c.l.s4 1966171168
      %v324 = vunpack.c.0.s8 %v323
      %v325 = vlaneseq
      %v326 = vshrl.u32 %v325, 7
      %v327 = vsub.s32 %v324, %v326
      %v328 = vrot.slane %v312, %v327
      %v330 = vunpack.c.l.s4 1966171168
      %v331 = vunpack.c.0.s8 %v330
      %v332 = vlaneseq
      %v333 = vshrl.u32 %v332, 7
      %v334 = vsub.s32 %v331, %v333
      %v335 = vrot.slane %v313, %v334
      %v337 = vunpack.c.l.s4 1966171168
      %v338 = vunpack.c.0.s8 %v337
      %v339 = vlaneseq
      %v340 = vshrl.u32 %v339, 7
      %v341 = vsub.s32 %v338, %v340
      %v342 = vrot.slane %v314, %v341
      %v343 = vcombine.high %v321, %v321
      %v344 = vcombine.high %v328, %v328
      %v345 = vcombine.high %v335, %v335
      %v346 = vcombine.high %v342, %v342
      %v347 = vcombine.high %v291, %v291
      %v349 = vunpack.c.l.s4 1966171168
      %v350 = vunpack.c.0.s8 %v349
      %v351 = vlaneseq
      %v352 = vshrl.u32 %v351, 7
      %v353 = vsub.s32 %v350, %v352
      %v354 = vrot.slane %v291, %v353
      %v356 = vunpack.c.l.s4 1966171168
      %v357 = vunpack.c.0.s8 %v356
      %v358 = vlaneseq
      %v359 = vshrl.u32 %v358, 7
      %v360 = vsub.s32 %v357, %v359
      %v361 = vrot.slane %v347, %v360
      %v362 = vcombine.high %v354, %v354
      %v363 = vcombine.high %v361, %v361
      %v365 = vunpack.c.l.s4 1966171168
      %v366 = vunpack.c.0.s8 %v365
      %v367 = vlaneseq
      %v368 = vshrl.u32 %v367, 7
      %v369 = vsub.s32 %v366, %v368
      %v370 = vrot.slane %v354, %v369
      %v372 = vunpack.c.l.s4 1966171168
      %v373 = vunpack.c.0.s8 %v372
      %v374 = vlaneseq
      %v375 = vshrl.u32 %v374, 7
      %v376 = vsub.s32 %v373, %v375
      %v377 = vrot.slane %v361, %v376
      %v379 = vunpack.c.l.s4 1966171168
      %v380 = vunpack.c.0.s8 %v379
      %v381 = vlaneseq
      %v382 = vshrl.u32 %v381, 7
      %v383 = vsub.s32 %v380, %v382
      %v384 = vrot.slane %v362, %v383
      %v386 = vunpack.c.l.s4 1966171168
      %v387 = vunpack.c.0.s8 %v386
      %v388 = vlaneseq
      %v389 = vshrl.u32 %v388, 7
      %v390 = vsub.s32 %v387, %v389
      %v391 = vrot.slane %v363, %v390
      %v392 = vcombine.high %v370, %v370
      %v393 = vcombine.high %v377, %v377
      %v394 = vcombine.high %v384, %v384
      %v395 = vcombine.high %v391, %v391
      %v396 = vcombine.high %v292, %v292
      %v398 = vunpack.c.l.s4 1966171168
      %v399 = vunpack.c.0.s8 %v398
      %v400 = vlaneseq
      %v401 = vshrl.u32 %v400, 7
      %v402 = vsub.s32 %v399, %v401
      %v403 = vrot.slane %v292, %v402
      %v405 = vunpack.c.l.s4 1966171168
      %v406 = vunpack.c.0.s8 %v405
      %v407 = vlaneseq
      %v408 = vshrl.u32 %v407, 7
      %v409 = vsub.s32 %v406, %v408
      %v410 = vrot.slane %v396, %v409
      %v411 = vcombine.high %v403, %v403
      %v412 = vcombine.high %v410, %v410
      %v414 = vunpack.c.l.s4 1966171168
      %v415 = vunpack.c.0.s8 %v414
      %v416 = vlaneseq
      %v417 = vshrl.u32 %v416, 7
      %v418 = vsub.s32 %v415, %v417
      %v419 = vrot.slane %v403, %v418
      %v421 = vunpack.c.l.s4 1966171168
      %v422 = vunpack.c.0.s8 %v421
      %v423 = vlaneseq
      %v424 = vshrl.u32 %v423, 7
      %v425 = vsub.s32 %v422, %v424
      %v426 = vrot.slane %v410, %v425
      %v428 = vunpack.c.l.s4 1966171168
      %v429 = vunpack.c.0.s8 %v428
      %v430 = vlaneseq
      %v431 = vshrl.u32 %v430, 7
      %v432 = vsub.s32 %v429, %v431
      %v433 = vrot.slane %v411, %v432
      %v435 = vunpack.c.l.s4 1966171168
      %v436 = vunpack.c.0.s8 %v435
      %v437 = vlaneseq
      %v438 = vshrl.u32 %v437, 7
      %v439 = vsub.s32 %v436, %v438
      %v440 = vrot.slane %v412, %v439
      %v441 = vcombine.high %v419, %v419
      %v442 = vcombine.high %v426, %v426
      %v443 = vcombine.high %v433, %v433
      %v444 = vcombine.high %v440, %v440
      %v445 = vcombine.high %v293, %v293
      %v447 = vunpack.c.l.s4 1966171168
      %v448 = vunpack.c.0.s8 %v447
      %v449 = vlaneseq
      %v450 = vshrl.u32 %v449, 7
      %v451 = vsub.s32 %v448, %v450
      %v452 = vrot.slane %v293, %v451
      %v454 = vunpack.c.l.s4 1966171168
      %v455 = vunpack.c.0.s8 %v454
      %v456 = vlaneseq
      %v457 = vshrl.u32 %v456, 7
      %v458 = vsub.s32 %v455, %v457
      %v459 = vrot.slane %v445, %v458
      %v460 = vcombine.high %v452, %v452
      %v461 = vcombine.high %v459, %v459
      %v463 = vunpack.c.l.s4 1966171168
      %v464 = vunpack.c.0.s8 %v463
      %v465 = vlaneseq
      %v466 = vshrl.u32 %v465, 7
      %v467 = vsub.s32 %v464, %v466
      %v468 = vrot.slane %v452, %v467
      %v470 = vunpack.c.l.s4 1966171168
      %v471 = vunpack.c.0.s8 %v470
      %v472 = vlaneseq
      %v473 = vshrl.u32 %v472, 7
      %v474 = vsub.s32 %v471, %v473
      %v475 = vrot.slane %v459, %v474
      %v477 = vunpack.c.l.s4 1966171168
      %v478 = vunpack.c.0.s8 %v477
      %v479 = vlaneseq
      %v480 = vshrl.u32 %v479, 7
      %v481 = vsub.s32 %v478, %v480
      %v482 = vrot.slane %v460, %v481
      %v484 = vunpack.c.l.s4 1966171168
      %v485 = vunpack.c.0.s8 %v484
      %v486 = vlaneseq
      %v487 = vshrl.u32 %v486, 7
      %v488 = vsub.s32 %v485, %v487
      %v489 = vrot.slane %v461, %v488
      %v490 = vcombine.high %v468, %v468
      %v491 = vcombine.high %v475, %v475
      %v492 = vcombine.high %v482, %v482
      %v493 = vcombine.high %v489, %v489
      %v494 = vunpack.i.l.s16 %v321
      %v495 = vunpack.i.h.s16 %v321
      %v496 = vunpack.i.l.s16 %v335
      %v497 = vunpack.i.h.s16 %v335
      %v498 = vunpack.i.l.s16 %v343
      %v499 = vunpack.i.h.s16 %v343
      %v500 = vunpack.i.l.s16 %v345
      %v501 = vunpack.i.h.s16 %v345
      %v502 = vunpack.i.l.s16 %v328
      %v503 = vunpack.i.h.s16 %v328
      %v504 = vunpack.i.l.s16 %v342
      %v505 = vunpack.i.h.s16 %v342
      %v506 = vunpack.i.l.s16 %v344
      %v507 = vunpack.i.h.s16 %v344
      %v508 = vunpack.i.l.s16 %v346
      %v509 = vunpack.i.h.s16 %v346
      %v510 = vunpack.i.l.s16 %v370
      %v511 = vunpack.i.h.s16 %v370
      %v512 = vunpack.i.l.s16 %v384
      %v513 = vunpack.i.h.s16 %v384
      %v514 = vunpack.i.l.s16 %v392
      %v515 = vunpack.i.h.s16 %v392
      %v516 = vunpack.i.l.s16 %v394
      %v517 = vunpack.i.h.s16 %v394
      %v518 = vunpack.i.l.s16 %v377
      %v519 = vunpack.i.h.s16 %v377
      %v520 = vunpack.i.l.s16 %v391
      %v521 = vunpack.i.h.s16 %v391
      %v522 = vunpack.i.l.s16 %v393
      %v523 = vunpack.i.h.s16 %v393
      %v524 = vunpack.i.l.s16 %v395
      %v525 = vunpack.i.h.s16 %v395
      %v526 = vunpack.i.l.s16 %v419
      %v527 = vunpack.i.h.s16 %v419
      %v528 = vunpack.i.l.s16 %v433
      %v529 = vunpack.i.h.s16 %v433
      %v530 = vunpack.i.l.s16 %v441
      %v531 = vunpack.i.h.s16 %v441
      %v532 = vunpack.i.l.s16 %v443
      %v533 = vunpack.i.h.s16 %v443
      %v534 = vunpack.i.l.s16 %v426
      %v535 = vunpack.i.h.s16 %v426
      %v536 = vunpack.i.l.s16 %v440
      %v537 = vunpack.i.h.s16 %v440
      %v538 = vunpack.i.l.s16 %v442
      %v539 = vunpack.i.h.s16 %v442
      %v540 = vunpack.i.l.s16 %v444
      %v541 = vunpack.i.h.s16 %v444
      %v542 = vunpack.i.l.s16 %v468
      %v543 = vunpack.i.h.s16 %v468
      %v544 = vunpack.i.l.s16 %v482
      %v545 = vunpack.i.h.s16 %v482
      %v546 = vunpack.i.l.s16 %v490
      %v547 = vunpack.i.h.s16 %v490
      %v548 = vunpack.i.l.s16 %v492
      %v549 = vunpack.i.h.s16 %v492
      %v550 = vunpack.i.l.s16 %v475
      %v551 = vunpack.i.h.s16 %v475
      %v552 = vunpack.i.l.s16 %v489
      %v553 = vunpack.i.h.s16 %v489
      %v554 = vunpack.i.l.s16 %v491
      %v555 = vunpack.i.h.s16 %v491
      %v556 = vunpack.i.l.s16 %v493
      %v557 = vunpack.i.h.s16 %v493
      %v558 = vpack.i.b16 %v494, %v494
      %v559 = vpack.i.b16 %v495, %v495
      %v560 = vpack.i.b16 %v496, %v496
      %v561 = vpack.i.b16 %v497, %v497
      %v562 = vpack.i.b16 %v498, %v498
      %v563 = vpack.i.b16 %v499, %v499
      %v564 = vpack.i.b16 %v500, %v500
      %v565 = vpack.i.b16 %v501, %v501
      %v566 = vpack.i.b16 %v502, %v502
      %v567 = vpack.i.b16 %v503, %v503
      %v568 = vpack.i.b16 %v504, %v504
      %v569 = vpack.i.b16 %v505, %v505
      %v570 = vpack.i.b16 %v506, %v506
      %v571 = vpack.i.b16 %v507, %v507
      %v572 = vpack.i.b16 %v508, %v508
      %v573 = vpack.i.b16 %v509, %v509
      %v574 = vpack.i.b16 %v510, %v510
      %v575 = vpack.i.b16 %v511, %v511
      %v576 = vpack.i.b16 %v512, %v512
      %v577 = vpack.i.b16 %v513, %v513
      %v578 = vpack.i.b16 %v514, %v514
      %v579 = vpack.i.b16 %v515, %v515
      %v580 = vpack.i.b16 %v516, %v516
      %v581 = vpack.i.b16 %v517, %v517
      %v582 = vpack.i.b16 %v518, %v518
      %v583 = vpack.i.b16 %v519, %v519
      %v584 = vpack.i.b16 %v520, %v520
      %v585 = vpack.i.b16 %v521, %v521
      %v586 = vpack.i.b16 %v522, %v522
      %v587 = vpack.i.b16 %v523, %v523
      %v588 = vpack.i.b16 %v524, %v524
      %v589 = vpack.i.b16 %v525, %v525
      %v590 = vpack.i.b16 %v526, %v526
      %v591 = vpack.i.b16 %v527, %v527
      %v592 = vpack.i.b16 %v528, %v528
      %v593 = vpack.i.b16 %v529, %v529
      %v594 = vpack.i.b16 %v530, %v530
      %v595 = vpack.i.b16 %v531, %v531
      %v596 = vpack.i.b16 %v532, %v532
      %v597 = vpack.i.b16 %v533, %v533
      %v598 = vpack.i.b16 %v534, %v534
      %v599 = vpack.i.b16 %v535, %v535
      %v600 = vpack.i.b16 %v536, %v536
      %v601 = vpack.i.b16 %v537, %v537
      %v602 = vpack.i.b16 %v538, %v538
      %v603 = vpack.i.b16 %v539, %v539
      %v604 = vpack.i.b16 %v540, %v540
      %v605 = vpack.i.b16 %v541, %v541
      %v606 = vpack.i.b16 %v542, %v542
      %v607 = vpack.i.b16 %v543, %v543
      %v608 = vpack.i.b16 %v544, %v544
      %v609 = vpack.i.b16 %v545, %v545
      %v610 = vpack.i.b16 %v546, %v546
      %v611 = vpack.i.b16 %v547, %v547
      %v612 = vpack.i.b16 %v548, %v548
      %v613 = vpack.i.b16 %v549, %v549
      %v614 = vpack.i.b16 %v550, %v550
      %v615 = vpack.i.b16 %v551, %v551
      %v616 = vpack.i.b16 %v552, %v552
      %v617 = vpack.i.b16 %v553, %v553
      %v618 = vpack.i.b16 %v554, %v554
      %v619 = vpack.i.b16 %v555, %v555
      %v620 = vpack.i.b16 %v556, %v556
      %v621 = vpack.i.b16 %v557, %v557
      %v622 = vlaneseq
      %v623 = vshrl.u32 %v622, 7
      %v624 = vsub.s32 0, %v623
      %v625 = vrot.slane %v558, %v624
      %v626 = vlaneseq
      %v627 = vshrl.u32 %v626, 7
      %v628 = vsub.s32 0, %v627
      %v629 = vrot.slane %v559, %v628
      %v630 = vlaneseq
      %v631 = vshrl.u32 %v630, 7
      %v632 = vsub.s32 0, %v631
      %v633 = vrot.slane %v560, %v632
      %v634 = vlaneseq
      %v635 = vshrl.u32 %v634, 7
      %v636 = vsub.s32 0, %v635
      %v637 = vrot.slane %v561, %v636
      %v638 = vlaneseq
      %v639 = vshrl.u32 %v638, 7
      %v640 = vsub.s32 0, %v639
      %v641 = vrot.slane %v562, %v640
      %v642 = vlaneseq
      %v643 = vshrl.u32 %v642, 7
      %v644 = vsub.s32 0, %v643
      %v645 = vrot.slane %v563, %v644
      %v646 = vlaneseq
      %v647 = vshrl.u32 %v646, 7
      %v648 = vsub.s32 0, %v647
      %v649 = vrot.slane %v564, %v648
      %v650 = vlaneseq
      %v651 = vshrl.u32 %v650, 7
      %v652 = vsub.s32 0, %v651
      %v653 = vrot.slane %v565, %v652
      %v654 = vlaneseq
      %v655 = vshrl.u32 %v654, 7
      %v656 = vsub.s32 0, %v655
      %v657 = vrot.slane %v566, %v656
      %v658 = vlaneseq
      %v659 = vshrl.u32 %v658, 7
      %v660 = vsub.s32 0, %v659
      %v661 = vrot.slane %v567, %v660
      %v662 = vlaneseq
      %v663 = vshrl.u32 %v662, 7
      %v664 = vsub.s32 0, %v663
      %v665 = vrot.slane %v568, %v664
      %v666 = vlaneseq
      %v667 = vshrl.u32 %v666, 7
      %v668 = vsub.s32 0, %v667
      %v669 = vrot.slane %v569, %v668
      %v670 = vlaneseq
      %v671 = vshrl.u32 %v670, 7
      %v672 = vsub.s32 0, %v671
      %v673 = vrot.slane %v570, %v672
      %v674 = vlaneseq
      %v675 = vshrl.u32 %v674, 7
      %v676 = vsub.s32 0, %v675
      %v677 = vrot.slane %v571, %v676
      %v678 = vlaneseq
      %v679 = vshrl.u32 %v678, 7
      %v680 = vsub.s32 0, %v679
      %v681 = vrot.slane %v572, %v680
      %v682 = vlaneseq
      %v683 = vshrl.u32 %v682, 7
      %v684 = vsub.s32 0, %v683
      %v685 = vrot.slane %v573, %v684
      %v686 = vlaneseq
      %v687 = vshrl.u32 %v686, 7
      %v688 = vsub.s32 0, %v687
      %v689 = vrot.slane %v574, %v688
      %v690 = vlaneseq
      %v691 = vshrl.u32 %v690, 7
      %v692 = vsub.s32 0, %v691
      %v693 = vrot.slane %v575, %v692
      %v694 = vlaneseq
      %v695 = vshrl.u32 %v694, 7
      %v696 = vsub.s32 0, %v695
      %v697 = vrot.slane %v576, %v696
      %v698 = vlaneseq
      %v699 = vshrl.u32 %v698, 7
      %v700 = vsub.s32 0, %v699
      %v701 = vrot.slane %v577, %v700
      %v702 = vlaneseq
      %v703 = vshrl.u32 %v702, 7
      %v704 = vsub.s32 0, %v703
      %v705 = vrot.slane %v578, %v704
      %v706 = vlaneseq
      %v707 = vshrl.u32 %v706, 7
      %v708 = vsub.s32 0, %v707
      %v709 = vrot.slane %v579, %v708
      %v710 = vlaneseq
      %v711 = vshrl.u32 %v710, 7
      %v712 = vsub.s32 0, %v711
      %v713 = vrot.slane %v580, %v712
      %v714 = vlaneseq
      %v715 = vshrl.u32 %v714, 7
      %v716 = vsub.s32 0, %v715
      %v717 = vrot.slane %v581, %v716
      %v718 = vlaneseq
      %v719 = vshrl.u32 %v718, 7
      %v720 = vsub.s32 0, %v719
      %v721 = vrot.slane %v582, %v720
      %v722 = vlaneseq
      %v723 = vshrl.u32 %v722, 7
      %v724 = vsub.s32 0, %v723
      %v725 = vrot.slane %v583, %v724
      %v726 = vlaneseq
      %v727 = vshrl.u32 %v726, 7
      %v728 = vsub.s32 0, %v727
      %v729 = vrot.slane %v584, %v728
      %v730 = vlaneseq
      %v731 = vshrl.u32 %v730, 7
      %v732 = vsub.s32 0, %v731
      %v733 = vrot.slane %v585, %v732
      %v734 = vlaneseq
      %v735 = vshrl.u32 %v734, 7
      %v736 = vsub.s32 0, %v735
      %v737 = vrot.slane %v586, %v736
      %v738 = vlaneseq
      %v739 = vshrl.u32 %v738, 7
      %v740 = vsub.s32 0, %v739
      %v741 = vrot.slane %v587, %v740
      %v742 = vlaneseq
      %v743 = vshrl.u32 %v742, 7
      %v744 = vsub.s32 0, %v743
      %v745 = vrot.slane %v588, %v744
      %v746 = vlaneseq
      %v747 = vshrl.u32 %v746, 7
      %v748 = vsub.s32 0, %v747
      %v749 = vrot.slane %v589, %v748
      %v750 = vlaneseq
      %v751 = vshrl.u32 %v750, 7
      %v752 = vsub.s32 0, %v751
      %v753 = vrot.slane %v590, %v752
      %v754 = vlaneseq
      %v755 = vshrl.u32 %v754, 7
      %v756 = vsub.s32 0, %v755
      %v757 = vrot.slane %v591, %v756
      %v758 = vlaneseq
      %v759 = vshrl.u32 %v758, 7
      %v760 = vsub.s32 0, %v759
      %v761 = vrot.slane %v592, %v760
      %v762 = vlaneseq
      %v763 = vshrl.u32 %v762, 7
      %v764 = vsub.s32 0, %v763
      %v765 = vrot.slane %v593, %v764
      %v766 = vlaneseq
      %v767 = vshrl.u32 %v766, 7
      %v768 = vsub.s32 0, %v767
      %v769 = vrot.slane %v594, %v768
      %v770 = vlaneseq
      %v771 = vshrl.u32 %v770, 7
      %v772 = vsub.s32 0, %v771
      %v773 = vrot.slane %v595, %v772
      %v774 = vlaneseq
      %v775 = vshrl.u32 %v774, 7
      %v776 = vsub.s32 0, %v775
      %v777 = vrot.slane %v596, %v776
      %v778 = vlaneseq
      %v779 = vshrl.u32 %v778, 7
      %v780 = vsub.s32 0, %v779
      %v781 = vrot.slane %v597, %v780
      %v782 = vlaneseq
      %v783 = vshrl.u32 %v782, 7
      %v784 = vsub.s32 0, %v783
      %v785 = vrot.slane %v598, %v784
      %v786 = vlaneseq
      %v787 = vshrl.u32 %v786, 7
      %v788 = vsub.s32 0, %v787
      %v789 = vrot.slane %v599, %v788
      %v790 = vlaneseq
      %v791 = vshrl.u32 %v790, 7
      %v792 = vsub.s32 0, %v791
      %v793 = vrot.slane %v600, %v792
      %v794 = vlaneseq
      %v795 = vshrl.u32 %v794, 7
      %v796 = vsub.s32 0, %v795
      %v797 = vrot.slane %v601, %v796
      %v798 = vlaneseq
      %v799 = vshrl.u32 %v798, 7
      %v800 = vsub.s32 0, %v799
      %v801 = vrot.slane %v602, %v800
      %v802 = vlaneseq
      %v803 = vshrl.u32 %v802, 7
      %v804 = vsub.s32 0, %v803
      %v805 = vrot.slane %v603, %v804
      %v806 = vlaneseq
      %v807 = vshrl.u32 %v806, 7
      %v808 = vsub.s32 0, %v807
      %v809 = vrot.slane %v604, %v808
      %v810 = vlaneseq
      %v811 = vshrl.u32 %v810, 7
      %v812 = vsub.s32 0, %v811
      %v813 = vrot.slane %v605, %v812
      %v814 = vlaneseq
      %v815 = vshrl.u32 %v814, 7
      %v816 = vsub.s32 0, %v815
      %v817 = vrot.slane %v606, %v816
      %v818 = vlaneseq
      %v819 = vshrl.u32 %v818, 7
      %v820 = vsub.s32 0, %v819
      %v821 = vrot.slane %v607, %v820
      %v822 = vlaneseq
      %v823 = vshrl.u32 %v822, 7
      %v824 = vsub.s32 0, %v823
      %v825 = vrot.slane %v608, %v824
      %v826 = vlaneseq
      %v827 = vshrl.u32 %v826, 7
      %v828 = vsub.s32 0, %v827
      %v829 = vrot.slane %v609, %v828
      %v830 = vlaneseq
      %v831 = vshrl.u32 %v830, 7
      %v832 = vsub.s32 0, %v831
      %v833 = vrot.slane %v610, %v832
      %v834 = vlaneseq
      %v835 = vshrl.u32 %v834, 7
      %v836 = vsub.s32 0, %v835
      %v837 = vrot.slane %v611, %v836
      %v838 = vlaneseq
      %v839 = vshrl.u32 %v838, 7
      %v840 = vsub.s32 0, %v839
      %v841 = vrot.slane %v612, %v840
      %v842 = vlaneseq
      %v843 = vshrl.u32 %v842, 7
      %v844 = vsub.s32 0, %v843
      %v845 = vrot.slane %v613, %v844
      %v846 = vlaneseq
      %v847 = vshrl.u32 %v846, 7
      %v848 = vsub.s32 0, %v847
      %v849 = vrot.slane %v614, %v848
      %v850 = vlaneseq
      %v851 = vshrl.u32 %v850, 7
      %v852 = vsub.s32 0, %v851
      %v853 = vrot.slane %v615, %v852
      %v854 = vlaneseq
      %v855 = vshrl.u32 %v854, 7
      %v856 = vsub.s32 0, %v855
      %v857 = vrot.slane %v616, %v856
      %v858 = vlaneseq
      %v859 = vshrl.u32 %v858, 7
      %v860 = vsub.s32 0, %v859
      %v861 = vrot.slane %v617, %v860
      %v862 = vlaneseq
      %v863 = vshrl.u32 %v862, 7
      %v864 = vsub.s32 0, %v863
      %v865 = vrot.slane %v618, %v864
      %v866 = vlaneseq
      %v867 = vshrl.u32 %v866, 7
      %v868 = vsub.s32 0, %v867
      %v869 = vrot.slane %v619, %v868
      %v870 = vlaneseq
      %v871 = vshrl.u32 %v870, 7
      %v872 = vsub.s32 0, %v871
      %v873 = vrot.slane %v620, %v872
      %v874 = vlaneseq
      %v875 = vshrl.u32 %v874, 7
      %v876 = vsub.s32 0, %v875
      %v877 = vrot.slane %v621, %v876
      %942 = vrot.lane.b32.xlu0 %v625, 124
      %v943 = vpop.permute.xlu0 %942
      %944 = vrot.lane.b32.xlu0 %v629, 124
      %v945 = vpop.permute.xlu0 %944
      %946 = vrot.lane.b32.xlu0 %v633, 124
      %v947 = vpop.permute.xlu0 %946
      %948 = vrot.lane.b32.xlu0 %v637, 124
      %v949 = vpop.permute.xlu0 %948
      %950 = vrot.lane.b32.xlu0 %v641, 124
      %v951 = vpop.permute.xlu0 %950
      %952 = vrot.lane.b32.xlu0 %v645, 124
      %v953 = vpop.permute.xlu0 %952
      %954 = vrot.lane.b32.xlu0 %v649, 124
      %v955 = vpop.permute.xlu0 %954
      %956 = vrot.lane.b32.xlu0 %v653, 124
      %v957 = vpop.permute.xlu0 %956
      %958 = vrot.lane.b32.xlu0 %v657, 124
      %v959 = vpop.permute.xlu0 %958
      %960 = vrot.lane.b32.xlu0 %v661, 124
      %v961 = vpop.permute.xlu0 %960
      %962 = vrot.lane.b32.xlu0 %v665, 124
      %v963 = vpop.permute.xlu0 %962
      %964 = vrot.lane.b32.xlu0 %v669, 124
      %v965 = vpop.permute.xlu0 %964
      %966 = vrot.lane.b32.xlu0 %v673, 124
      %v967 = vpop.permute.xlu0 %966
      %968 = vrot.lane.b32.xlu0 %v677, 124
      %v969 = vpop.permute.xlu0 %968
      %970 = vrot.lane.b32.xlu0 %v681, 124
      %v971 = vpop.permute.xlu0 %970
      %972 = vrot.lane.b32.xlu0 %v685, 124
      %v973 = vpop.permute.xlu0 %972
      %974 = vrot.lane.b32.xlu0 %v689, 124
      %v975 = vpop.permute.xlu0 %974
      %976 = vrot.lane.b32.xlu0 %v693, 124
      %v977 = vpop.permute.xlu0 %976
      %978 = vrot.lane.b32.xlu0 %v697, 124
      %v979 = vpop.permute.xlu0 %978
      %980 = vrot.lane.b32.xlu0 %v701, 124
      %v981 = vpop.permute.xlu0 %980
      %982 = vrot.lane.b32.xlu0 %v705, 124
      %v983 = vpop.permute.xlu0 %982
      %984 = vrot.lane.b32.xlu0 %v709, 124
      %v985 = vpop.permute.xlu0 %984
      %986 = vrot.lane.b32.xlu0 %v713, 124
      %v987 = vpop.permute.xlu0 %986
      %988 = vrot.lane.b32.xlu0 %v717, 124
      %v989 = vpop.permute.xlu0 %988
      %990 = vrot.lane.b32.xlu0 %v721, 124
      %v991 = vpop.permute.xlu0 %990
      %992 = vrot.lane.b32.xlu0 %v725, 124
      %v993 = vpop.permute.xlu0 %992
      %994 = vrot.lane.b32.xlu0 %v729, 124
      %v995 = vpop.permute.xlu0 %994
      %996 = vrot.lane.b32.xlu0 %v733, 124
      %v997 = vpop.permute.xlu0 %996
      %998 = vrot.lane.b32.xlu0 %v737, 124
      %v999 = vpop.permute.xlu0 %998
      %1000 = vrot.lane.b32.xlu0 %v741, 124
      %v1001 = vpop.permute.xlu0 %1000
      %1002 = vrot.lane.b32.xlu0 %v745, 124
      %v1003 = vpop.permute.xlu0 %1002
      %1004 = vrot.lane.b32.xlu0 %v749, 124
      %v1005 = vpop.permute.xlu0 %1004
      %1006 = vrot.lane.b32.xlu0 %v753, 124
      %v1007 = vpop.permute.xlu0 %1006
      %1008 = vrot.lane.b32.xlu0 %v757, 124
      %v1009 = vpop.permute.xlu0 %1008
      %1010 = vrot.lane.b32.xlu0 %v761, 124
      %v1011 = vpop.permute.xlu0 %1010
      %1012 = vrot.lane.b32.xlu0 %v765, 124
      %v1013 = vpop.permute.xlu0 %1012
      %1014 = vrot.lane.b32.xlu0 %v769, 124
      %v1015 = vpop.permute.xlu0 %1014
      %1016 = vrot.lane.b32.xlu0 %v773, 124
      %v1017 = vpop.permute.xlu0 %1016
      %1018 = vrot.lane.b32.xlu0 %v777, 124
      %v1019 = vpop.permute.xlu0 %1018
      %1020 = vrot.lane.b32.xlu0 %v781, 124
      %v1021 = vpop.permute.xlu0 %1020
      %1022 = vrot.lane.b32.xlu0 %v785, 124
      %v1023 = vpop.permute.xlu0 %1022
      %1024 = vrot.lane.b32.xlu0 %v789, 124
      %v1025 = vpop.permute.xlu0 %1024
      %1026 = vrot.lane.b32.xlu0 %v793, 124
      %v1027 = vpop.permute.xlu0 %1026
      %1028 = vrot.lane.b32.xlu0 %v797, 124
      %v1029 = vpop.permute.xlu0 %1028
      %1030 = vrot.lane.b32.xlu0 %v801, 124
      %v1031 = vpop.permute.xlu0 %1030
      %1032 = vrot.lane.b32.xlu0 %v805, 124
      %v1033 = vpop.permute.xlu0 %1032
      %1034 = vrot.lane.b32.xlu0 %v809, 124
      %v1035 = vpop.permute.xlu0 %1034
      %1036 = vrot.lane.b32.xlu0 %v813, 124
      %v1037 = vpop.permute.xlu0 %1036
      %1038 = vrot.lane.b32.xlu0 %v817, 124
      %v1039 = vpop.permute.xlu0 %1038
      %1040 = vrot.lane.b32.xlu0 %v821, 124
      %v1041 = vpop.permute.xlu0 %1040
      %1042 = vrot.lane.b32.xlu0 %v825, 124
      %v1043 = vpop.permute.xlu0 %1042
      %1044 = vrot.lane.b32.xlu0 %v829, 124
      %v1045 = vpop.permute.xlu0 %1044
      %1046 = vrot.lane.b32.xlu0 %v833, 124
      %v1047 = vpop.permute.xlu0 %1046
      %1048 = vrot.lane.b32.xlu0 %v837, 124
      %v1049 = vpop.permute.xlu0 %1048
      %1050 = vrot.lane.b32.xlu0 %v841, 124
      %v1051 = vpop.permute.xlu0 %1050
      %1052 = vrot.lane.b32.xlu0 %v845, 124
      %v1053 = vpop.permute.xlu0 %1052
      %1054 = vrot.lane.b32.xlu0 %v849, 124
      %v1055 = vpop.permute.xlu0 %1054
      %1056 = vrot.lane.b32.xlu0 %v853, 124
      %v1057 = vpop.permute.xlu0 %1056
      %1058 = vrot.lane.b32.xlu0 %v857, 124
      %v1059 = vpop.permute.xlu0 %1058
      %1060 = vrot.lane.b32.xlu0 %v861, 124
      %v1061 = vpop.permute.xlu0 %1060
      %1062 = vrot.lane.b32.xlu0 %v865, 124
      %v1063 = vpop.permute.xlu0 %1062
      %1064 = vrot.lane.b32.xlu0 %v869, 124
      %v1065 = vpop.permute.xlu0 %1064
      %1066 = vrot.lane.b32.xlu0 %v873, 124
      %v1067 = vpop.permute.xlu0 %1066
      %1068 = vrot.lane.b32.xlu0 %v877, 124
      %v1069 = vpop.permute.xlu0 %1068
      %vm1134 = vcmask 1040384
      %vm1135 = vsmask.f32 256
      %vm1136 = vmand %vm1134, %vm1135
      %v1137 = vsel %vm1136, %v625, %v943
      %v1138 = vsel %vm1136, %v629, %v945
      %v1139 = vsel %vm1136, %v633, %v947
      %v1140 = vsel %vm1136, %v637, %v949
      %v1141 = vsel %vm1136, %v641, %v951
      %v1142 = vsel %vm1136, %v645, %v953
      %v1143 = vsel %vm1136, %v649, %v955
      %v1144 = vsel %vm1136, %v653, %v957
      %v1145 = vsel %vm1136, %v657, %v959
      %v1146 = vsel %vm1136, %v661, %v961
      %v1147 = vsel %vm1136, %v665, %v963
      %v1148 = vsel %vm1136, %v669, %v965
      %v1149 = vsel %vm1136, %v673, %v967
      %v1150 = vsel %vm1136, %v677, %v969
      %v1151 = vsel %vm1136, %v681, %v971
      %v1152 = vsel %vm1136, %v685, %v973
      %v1153 = vsel %vm1136, %v689, %v975
      %v1154 = vsel %vm1136, %v693, %v977
      %v1155 = vsel %vm1136, %v697, %v979
      %v1156 = vsel %vm1136, %v701, %v981
      %v1157 = vsel %vm1136, %v705, %v983
      %v1158 = vsel %vm1136, %v709, %v985
      %v1159 = vsel %vm1136, %v713, %v987
      %v1160 = vsel %vm1136, %v717, %v989
      %v1161 = vsel %vm1136, %v721, %v991
      %v1162 = vsel %vm1136, %v725, %v993
      %v1163 = vsel %vm1136, %v729, %v995
      %v1164 = vsel %vm1136, %v733, %v997
      %v1165 = vsel %vm1136, %v737, %v999
      %v1166 = vsel %vm1136, %v741, %v1001
      %v1167 = vsel %vm1136, %v745, %v1003
      %v1168 = vsel %vm1136, %v749, %v1005
      %v1169 = vsel %vm1136, %v753, %v1007
      %v1170 = vsel %vm1136, %v757, %v1009
      %v1171 = vsel %vm1136, %v761, %v1011
      %v1172 = vsel %vm1136, %v765, %v1013
      %v1173 = vsel %vm1136, %v769, %v1015
      %v1174 = vsel %vm1136, %v773, %v1017
      %v1175 = vsel %vm1136, %v777, %v1019
      %v1176 = vsel %vm1136, %v781, %v1021
      %v1177 = vsel %vm1136, %v785, %v1023
      %v1178 = vsel %vm1136, %v789, %v1025
      %v1179 = vsel %vm1136, %v793, %v1027
      %v1180 = vsel %vm1136, %v797, %v1029
      %v1181 = vsel %vm1136, %v801, %v1031
      %v1182 = vsel %vm1136, %v805, %v1033
      %v1183 = vsel %vm1136, %v809, %v1035
      %v1184 = vsel %vm1136, %v813, %v1037
      %v1185 = vsel %vm1136, %v817, %v1039
      %v1186 = vsel %vm1136, %v821, %v1041
      %v1187 = vsel %vm1136, %v825, %v1043
      %v1188 = vsel %vm1136, %v829, %v1045
      %v1189 = vsel %vm1136, %v833, %v1047
      %v1190 = vsel %vm1136, %v837, %v1049
      %v1191 = vsel %vm1136, %v841, %v1051
      %v1192 = vsel %vm1136, %v845, %v1053
      %v1193 = vsel %vm1136, %v849, %v1055
      %v1194 = vsel %vm1136, %v853, %v1057
      %v1195 = vsel %vm1136, %v857, %v1059
      %v1196 = vsel %vm1136, %v861, %v1061
      %v1197 = vsel %vm1136, %v865, %v1063
      %v1198 = vsel %vm1136, %v869, %v1065
      %v1199 = vsel %vm1136, %v873, %v1067
      %v1200 = vsel %vm1136, %v877, %v1069
      %1265 = vrot.lane.b32.xlu0 %v1137, 120
      %v1266 = vpop.permute.xlu0 %1265
      %1267 = vrot.lane.b32.xlu0 %v1138, 120
      %v1268 = vpop.permute.xlu0 %1267
      %1269 = vrot.lane.b32.xlu0 %v1139, 120
      %v1270 = vpop.permute.xlu0 %1269
      %1271 = vrot.lane.b32.xlu0 %v1140, 120
      %v1272 = vpop.permute.xlu0 %1271
      %1273 = vrot.lane.b32.xlu0 %v1141, 120
      %v1274 = vpop.permute.xlu0 %1273
      %1275 = vrot.lane.b32.xlu0 %v1142, 120
      %v1276 = vpop.permute.xlu0 %1275
      %1277 = vrot.lane.b32.xlu0 %v1143, 120
      %v1278 = vpop.permute.xlu0 %1277
      %1279 = vrot.lane.b32.xlu0 %v1144, 120
      %v1280 = vpop.permute.xlu0 %1279
      %1281 = vrot.lane.b32.xlu0 %v1145, 120
      %v1282 = vpop.permute.xlu0 %1281
      %1283 = vrot.lane.b32.xlu0 %v1146, 120
      %v1284 = vpop.permute.xlu0 %1283
      %1285 = vrot.lane.b32.xlu0 %v1147, 120
      %v1286 = vpop.permute.xlu0 %1285
      %1287 = vrot.lane.b32.xlu0 %v1148, 120
      %v1288 = vpop.permute.xlu0 %1287
      %1289 = vrot.lane.b32.xlu0 %v1149, 120
      %v1290 = vpop.permute.xlu0 %1289
      %1291 = vrot.lane.b32.xlu0 %v1150, 120
      %v1292 = vpop.permute.xlu0 %1291
      %1293 = vrot.lane.b32.xlu0 %v1151, 120
      %v1294 = vpop.permute.xlu0 %1293
      %1295 = vrot.lane.b32.xlu0 %v1152, 120
      %v1296 = vpop.permute.xlu0 %1295
      %1297 = vrot.lane.b32.xlu0 %v1153, 120
      %v1298 = vpop.permute.xlu0 %1297
      %1299 = vrot.lane.b32.xlu0 %v1154, 120
      %v1300 = vpop.permute.xlu0 %1299
      %1301 = vrot.lane.b32.xlu0 %v1155, 120
      %v1302 = vpop.permute.xlu0 %1301
      %1303 = vrot.lane.b32.xlu0 %v1156, 120
      %v1304 = vpop.permute.xlu0 %1303
      %1305 = vrot.lane.b32.xlu0 %v1157, 120
      %v1306 = vpop.permute.xlu0 %1305
      %1307 = vrot.lane.b32.xlu0 %v1158, 120
      %v1308 = vpop.permute.xlu0 %1307
      %1309 = vrot.lane.b32.xlu0 %v1159, 120
      %v1310 = vpop.permute.xlu0 %1309
      %1311 = vrot.lane.b32.xlu0 %v1160, 120
      %v1312 = vpop.permute.xlu0 %1311
      %1313 = vrot.lane.b32.xlu0 %v1161, 120
      %v1314 = vpop.permute.xlu0 %1313
      %1315 = vrot.lane.b32.xlu0 %v1162, 120
      %v1316 = vpop.permute.xlu0 %1315
      %1317 = vrot.lane.b32.xlu0 %v1163, 120
      %v1318 = vpop.permute.xlu0 %1317
      %1319 = vrot.lane.b32.xlu0 %v1164, 120
      %v1320 = vpop.permute.xlu0 %1319
      %1321 = vrot.lane.b32.xlu0 %v1165, 120
      %v1322 = vpop.permute.xlu0 %1321
      %1323 = vrot.lane.b32.xlu0 %v1166, 120
      %v1324 = vpop.permute.xlu0 %1323
      %1325 = vrot.lane.b32.xlu0 %v1167, 120
      %v1326 = vpop.permute.xlu0 %1325
      %1327 = vrot.lane.b32.xlu0 %v1168, 120
      %v1328 = vpop.permute.xlu0 %1327
      %1329 = vrot.lane.b32.xlu0 %v1169, 120
      %v1330 = vpop.permute.xlu0 %1329
      %1331 = vrot.lane.b32.xlu0 %v1170, 120
      %v1332 = vpop.permute.xlu0 %1331
      %1333 = vrot.lane.b32.xlu0 %v1171, 120
      %v1334 = vpop.permute.xlu0 %1333
      %1335 = vrot.lane.b32.xlu0 %v1172, 120
      %v1336 = vpop.permute.xlu0 %1335
      %1337 = vrot.lane.b32.xlu0 %v1173, 120
      %v1338 = vpop.permute.xlu0 %1337
      %1339 = vrot.lane.b32.xlu0 %v1174, 120
      %v1340 = vpop.permute.xlu0 %1339
      %1341 = vrot.lane.b32.xlu0 %v1175, 120
      %v1342 = vpop.permute.xlu0 %1341
      %1343 = vrot.lane.b32.xlu0 %v1176, 120
      %v1344 = vpop.permute.xlu0 %1343
      %1345 = vrot.lane.b32.xlu0 %v1177, 120
      %v1346 = vpop.permute.xlu0 %1345
      %1347 = vrot.lane.b32.xlu0 %v1178, 120
      %v1348 = vpop.permute.xlu0 %1347
      %1349 = vrot.lane.b32.xlu0 %v1179, 120
      %v1350 = vpop.permute.xlu0 %1349
      %1351 = vrot.lane.b32.xlu0 %v1180, 120
      %v1352 = vpop.permute.xlu0 %1351
      %1353 = vrot.lane.b32.xlu0 %v1181, 120
      %v1354 = vpop.permute.xlu0 %1353
      %1355 = vrot.lane.b32.xlu0 %v1182, 120
      %v1356 = vpop.permute.xlu0 %1355
      %1357 = vrot.lane.b32.xlu0 %v1183, 120
      %v1358 = vpop.permute.xlu0 %1357
      %1359 = vrot.lane.b32.xlu0 %v1184, 120
      %v1360 = vpop.permute.xlu0 %1359
      %1361 = vrot.lane.b32.xlu0 %v1185, 120
      %v1362 = vpop.permute.xlu0 %1361
      %1363 = vrot.lane.b32.xlu0 %v1186, 120
      %v1364 = vpop.permute.xlu0 %1363
      %1365 = vrot.lane.b32.xlu0 %v1187, 120
      %v1366 = vpop.permute.xlu0 %1365
      %1367 = vrot.lane.b32.xlu0 %v1188, 120
      %v1368 = vpop.permute.xlu0 %1367
      %1369 = vrot.lane.b32.xlu0 %v1189, 120
      %v1370 = vpop.permute.xlu0 %1369
      %1371 = vrot.lane.b32.xlu0 %v1190, 120
      %v1372 = vpop.permute.xlu0 %1371
      %1373 = vrot.lane.b32.xlu0 %v1191, 120
      %v1374 = vpop.permute.xlu0 %1373
      %1375 = vrot.lane.b32.xlu0 %v1192, 120
      %v1376 = vpop.permute.xlu0 %1375
      %1377 = vrot.lane.b32.xlu0 %v1193, 120
      %v1378 = vpop.permute.xlu0 %1377
      %1379 = vrot.lane.b32.xlu0 %v1194, 120
      %v1380 = vpop.permute.xlu0 %1379
      %1381 = vrot.lane.b32.xlu0 %v1195, 120
      %v1382 = vpop.permute.xlu0 %1381
      %1383 = vrot.lane.b32.xlu0 %v1196, 120
      %v1384 = vpop.permute.xlu0 %1383
      %1385 = vrot.lane.b32.xlu0 %v1197, 120
      %v1386 = vpop.permute.xlu0 %1385
      %1387 = vrot.lane.b32.xlu0 %v1198, 120
      %v1388 = vpop.permute.xlu0 %1387
      %1389 = vrot.lane.b32.xlu0 %v1199, 120
      %v1390 = vpop.permute.xlu0 %1389
      %1391 = vrot.lane.b32.xlu0 %v1200, 120
      %v1392 = vpop.permute.xlu0 %1391
      %v1393 = vcombine.low %v1137, %v1139
      %v1394 = vcombine.low %v1138, %v1140
      %v1396 = vunpack.c.l.s4 1935823168
      %v1397 = vunpack.c.0.s8 %v1396
      %v1398 = vlaneseq
      %v1399 = vshrl.u32 %v1398, 7
      %v1400 = vsub.s32 %v1397, %v1399
      %v1401 = vrot.slane %v1393, %v1400
      %v1403 = vunpack.c.l.s4 1935823168
      %v1404 = vunpack.c.0.s8 %v1403
      %v1405 = vlaneseq
      %v1406 = vshrl.u32 %v1405, 7
      %v1407 = vsub.s32 %v1404, %v1406
      %v1408 = vrot.slane %v1394, %v1407
      %v1409 = vcombine.low %v1401, %v1408
      %v1411 = vunpack.c.l.s4 1935823168
      %v1412 = vunpack.c.0.s8 %v1411
      %v1413 = vlaneseq
      %v1414 = vshrl.u32 %v1413, 7
      %v1415 = vsub.s32 %v1412, %v1414
      %v1416 = vrot.slane %v1409, %v1415
      %v1417 = vcombine.low %v1141, %v1143
      %v1418 = vcombine.low %v1142, %v1144
      %v1420 = vunpack.c.l.s4 1935823168
      %v1421 = vunpack.c.0.s8 %v1420
      %v1422 = vlaneseq
      %v1423 = vshrl.u32 %v1422, 7
      %v1424 = vsub.s32 %v1421, %v1423
      %v1425 = vrot.slane %v1417, %v1424
      %v1427 = vunpack.c.l.s4 1935823168
      %v1428 = vunpack.c.0.s8 %v1427
      %v1429 = vlaneseq
      %v1430 = vshrl.u32 %v1429, 7
      %v1431 = vsub.s32 %v1428, %v1430
      %v1432 = vrot.slane %v1418, %v1431
      %v1433 = vcombine.low %v1425, %v1432
      %v1435 = vunpack.c.l.s4 1935823168
      %v1436 = vunpack.c.0.s8 %v1435
      %v1437 = vlaneseq
      %v1438 = vshrl.u32 %v1437, 7
      %v1439 = vsub.s32 %v1436, %v1438
      %v1440 = vrot.slane %v1433, %v1439
      %v1441 = vcombine.low %v1266, %v1270
      %v1442 = vcombine.low %v1268, %v1272
      %v1444 = vunpack.c.l.s4 1935823168
      %v1445 = vunpack.c.0.s8 %v1444
      %v1446 = vlaneseq
      %v1447 = vshrl.u32 %v1446, 7
      %v1448 = vsub.s32 %v1445, %v1447
      %v1449 = vrot.slane %v1441, %v1448
      %v1451 = vunpack.c.l.s4 1935823168
      %v1452 = vunpack.c.0.s8 %v1451
      %v1453 = vlaneseq
      %v1454 = vshrl.u32 %v1453, 7
      %v1455 = vsub.s32 %v1452, %v1454
      %v1456 = vrot.slane %v1442, %v1455
      %v1457 = vcombine.low %v1449, %v1456
      %v1459 = vunpack.c.l.s4 1935823168
      %v1460 = vunpack.c.0.s8 %v1459
      %v1461 = vlaneseq
      %v1462 = vshrl.u32 %v1461, 7
      %v1463 = vsub.s32 %v1460, %v1462
      %v1464 = vrot.slane %v1457, %v1463
      %v1465 = vcombine.low %v1274, %v1278
      %v1466 = vcombine.low %v1276, %v1280
      %v1468 = vunpack.c.l.s4 1935823168
      %v1469 = vunpack.c.0.s8 %v1468
      %v1470 = vlaneseq
      %v1471 = vshrl.u32 %v1470, 7
      %v1472 = vsub.s32 %v1469, %v1471
      %v1473 = vrot.slane %v1465, %v1472
      %v1475 = vunpack.c.l.s4 1935823168
      %v1476 = vunpack.c.0.s8 %v1475
      %v1477 = vlaneseq
      %v1478 = vshrl.u32 %v1477, 7
      %v1479 = vsub.s32 %v1476, %v1478
      %v1480 = vrot.slane %v1466, %v1479
      %v1481 = vcombine.low %v1473, %v1480
      %v1483 = vunpack.c.l.s4 1935823168
      %v1484 = vunpack.c.0.s8 %v1483
      %v1485 = vlaneseq
      %v1486 = vshrl.u32 %v1485, 7
      %v1487 = vsub.s32 %v1484, %v1486
      %v1488 = vrot.slane %v1481, %v1487
      %v1489 = vcombine.low %v1145, %v1147
      %v1490 = vcombine.low %v1146, %v1148
      %v1492 = vunpack.c.l.s4 1935823168
      %v1493 = vunpack.c.0.s8 %v1492
      %v1494 = vlaneseq
      %v1495 = vshrl.u32 %v1494, 7
      %v1496 = vsub.s32 %v1493, %v1495
      %v1497 = vrot.slane %v1489, %v1496
      %v1499 = vunpack.c.l.s4 1935823168
      %v1500 = vunpack.c.0.s8 %v1499
      %v1501 = vlaneseq
      %v1502 = vshrl.u32 %v1501, 7
      %v1503 = vsub.s32 %v1500, %v1502
      %v1504 = vrot.slane %v1490, %v1503
      %v1505 = vcombine.low %v1497, %v1504
      %v1507 = vunpack.c.l.s4 1935823168
      %v1508 = vunpack.c.0.s8 %v1507
      %v1509 = vlaneseq
      %v1510 = vshrl.u32 %v1509, 7
      %v1511 = vsub.s32 %v1508, %v1510
      %v1512 = vrot.slane %v1505, %v1511
      %v1513 = vcombine.low %v1149, %v1151
      %v1514 = vcombine.low %v1150, %v1152
      %v1516 = vunpack.c.l.s4 1935823168
      %v1517 = vunpack.c.0.s8 %v1516
      %v1518 = vlaneseq
      %v1519 = vshrl.u32 %v1518, 7
      %v1520 = vsub.s32 %v1517, %v1519
      %v1521 = vrot.slane %v1513, %v1520
      %v1523 = vunpack.c.l.s4 1935823168
      %v1524 = vunpack.c.0.s8 %v1523
      %v1525 = vlaneseq
      %v1526 = vshrl.u32 %v1525, 7
      %v1527 = vsub.s32 %v1524, %v1526
      %v1528 = vrot.slane %v1514, %v1527
      %v1529 = vcombine.low %v1521, %v1528
      %v1531 = vunpack.c.l.s4 1935823168
      %v1532 = vunpack.c.0.s8 %v1531
      %v1533 = vlaneseq
      %v1534 = vshrl.u32 %v1533, 7
      %v1535 = vsub.s32 %v1532, %v1534
      %v1536 = vrot.slane %v1529, %v1535
      %v1537 = vcombine.low %v1282, %v1286
      %v1538 = vcombine.low %v1284, %v1288
      %v1540 = vunpack.c.l.s4 1935823168
      %v1541 = vunpack.c.0.s8 %v1540
      %v1542 = vlaneseq
      %v1543 = vshrl.u32 %v1542, 7
      %v1544 = vsub.s32 %v1541, %v1543
      %v1545 = vrot.slane %v1537, %v1544
      %v1547 = vunpack.c.l.s4 1935823168
      %v1548 = vunpack.c.0.s8 %v1547
      %v1549 = vlaneseq
      %v1550 = vshrl.u32 %v1549, 7
      %v1551 = vsub.s32 %v1548, %v1550
      %v1552 = vrot.slane %v1538, %v1551
      %v1553 = vcombine.low %v1545, %v1552
      %v1555 = vunpack.c.l.s4 1935823168
      %v1556 = vunpack.c.0.s8 %v1555
      %v1557 = vlaneseq
      %v1558 = vshrl.u32 %v1557, 7
      %v1559 = vsub.s32 %v1556, %v1558
      %v1560 = vrot.slane %v1553, %v1559
      %v1561 = vcombine.low %v1290, %v1294
      %v1562 = vcombine.low %v1292, %v1296
      %v1564 = vunpack.c.l.s4 1935823168
      %v1565 = vunpack.c.0.s8 %v1564
      %v1566 = vlaneseq
      %v1567 = vshrl.u32 %v1566, 7
      %v1568 = vsub.s32 %v1565, %v1567
      %v1569 = vrot.slane %v1561, %v1568
      %v1571 = vunpack.c.l.s4 1935823168
      %v1572 = vunpack.c.0.s8 %v1571
      %v1573 = vlaneseq
      %v1574 = vshrl.u32 %v1573, 7
      %v1575 = vsub.s32 %v1572, %v1574
      %v1576 = vrot.slane %v1562, %v1575
      %v1577 = vcombine.low %v1569, %v1576
      %v1579 = vunpack.c.l.s4 1935823168
      %v1580 = vunpack.c.0.s8 %v1579
      %v1581 = vlaneseq
      %v1582 = vshrl.u32 %v1581, 7
      %v1583 = vsub.s32 %v1580, %v1582
      %v1584 = vrot.slane %v1577, %v1583
      %v1585 = vcombine.low %v1153, %v1155
      %v1586 = vcombine.low %v1154, %v1156
      %v1588 = vunpack.c.l.s4 1935823168
      %v1589 = vunpack.c.0.s8 %v1588
      %v1590 = vlaneseq
      %v1591 = vshrl.u32 %v1590, 7
      %v1592 = vsub.s32 %v1589, %v1591
      %v1593 = vrot.slane %v1585, %v1592
      %v1595 = vunpack.c.l.s4 1935823168
      %v1596 = vunpack.c.0.s8 %v1595
      %v1597 = vlaneseq
      %v1598 = vshrl.u32 %v1597, 7
      %v1599 = vsub.s32 %v1596, %v1598
      %v1600 = vrot.slane %v1586, %v1599
      %v1601 = vcombine.low %v1593, %v1600
      %v1603 = vunpack.c.l.s4 1935823168
      %v1604 = vunpack.c.0.s8 %v1603
      %v1605 = vlaneseq
      %v1606 = vshrl.u32 %v1605, 7
      %v1607 = vsub.s32 %v1604, %v1606
      %v1608 = vrot.slane %v1601, %v1607
      %v1609 = vcombine.low %v1157, %v1159
      %v1610 = vcombine.low %v1158, %v1160
      %v1612 = vunpack.c.l.s4 1935823168
      %v1613 = vunpack.c.0.s8 %v1612
      %v1614 = vlaneseq
      %v1615 = vshrl.u32 %v1614, 7
      %v1616 = vsub.s32 %v1613, %v1615
      %v1617 = vrot.slane %v1609, %v1616
      %v1619 = vunpack.c.l.s4 1935823168
      %v1620 = vunpack.c.0.s8 %v1619
      %v1621 = vlaneseq
      %v1622 = vshrl.u32 %v1621, 7
      %v1623 = vsub.s32 %v1620, %v1622
      %v1624 = vrot.slane %v1610, %v1623
      %v1625 = vcombine.low %v1617, %v1624
      %v1627 = vunpack.c.l.s4 1935823168
      %v1628 = vunpack.c.0.s8 %v1627
      %v1629 = vlaneseq
      %v1630 = vshrl.u32 %v1629, 7
      %v1631 = vsub.s32 %v1628, %v1630
      %v1632 = vrot.slane %v1625, %v1631
      %v1633 = vcombine.low %v1298, %v1302
      %v1634 = vcombine.low %v1300, %v1304
      %v1636 = vunpack.c.l.s4 1935823168
      %v1637 = vunpack.c.0.s8 %v1636
      %v1638 = vlaneseq
      %v1639 = vshrl.u32 %v1638, 7
      %v1640 = vsub.s32 %v1637, %v1639
      %v1641 = vrot.slane %v1633, %v1640
      %v1643 = vunpack.c.l.s4 1935823168
      %v1644 = vunpack.c.0.s8 %v1643
      %v1645 = vlaneseq
      %v1646 = vshrl.u32 %v1645, 7
      %v1647 = vsub.s32 %v1644, %v1646
      %v1648 = vrot.slane %v1634, %v1647
      %v1649 = vcombine.low %v1641, %v1648
      %v1651 = vunpack.c.l.s4 1935823168
      %v1652 = vunpack.c.0.s8 %v1651
      %v1653 = vlaneseq
      %v1654 = vshrl.u32 %v1653, 7
      %v1655 = vsub.s32 %v1652, %v1654
      %v1656 = vrot.slane %v1649, %v1655
      %v1657 = vcombine.low %v1306, %v1310
      %v1658 = vcombine.low %v1308, %v1312
      %v1660 = vunpack.c.l.s4 1935823168
      %v1661 = vunpack.c.0.s8 %v1660
      %v1662 = vlaneseq
      %v1663 = vshrl.u32 %v1662, 7
      %v1664 = vsub.s32 %v1661, %v1663
      %v1665 = vrot.slane %v1657, %v1664
      %v1667 = vunpack.c.l.s4 1935823168
      %v1668 = vunpack.c.0.s8 %v1667
      %v1669 = vlaneseq
      %v1670 = vshrl.u32 %v1669, 7
      %v1671 = vsub.s32 %v1668, %v1670
      %v1672 = vrot.slane %v1658, %v1671
      %v1673 = vcombine.low %v1665, %v1672
      %v1675 = vunpack.c.l.s4 1935823168
      %v1676 = vunpack.c.0.s8 %v1675
      %v1677 = vlaneseq
      %v1678 = vshrl.u32 %v1677, 7
      %v1679 = vsub.s32 %v1676, %v1678
      %v1680 = vrot.slane %v1673, %v1679
      %v1681 = vcombine.low %v1161, %v1163
      %v1682 = vcombine.low %v1162, %v1164
      %v1684 = vunpack.c.l.s4 1935823168
      %v1685 = vunpack.c.0.s8 %v1684
      %v1686 = vlaneseq
      %v1687 = vshrl.u32 %v1686, 7
      %v1688 = vsub.s32 %v1685, %v1687
      %v1689 = vrot.slane %v1681, %v1688
      %v1691 = vunpack.c.l.s4 1935823168
      %v1692 = vunpack.c.0.s8 %v1691
      %v1693 = vlaneseq
      %v1694 = vshrl.u32 %v1693, 7
      %v1695 = vsub.s32 %v1692, %v1694
      %v1696 = vrot.slane %v1682, %v1695
      %v1697 = vcombine.low %v1689, %v1696
      %v1699 = vunpack.c.l.s4 1935823168
      %v1700 = vunpack.c.0.s8 %v1699
      %v1701 = vlaneseq
      %v1702 = vshrl.u32 %v1701, 7
      %v1703 = vsub.s32 %v1700, %v1702
      %v1704 = vrot.slane %v1697, %v1703
      %v1705 = vcombine.low %v1165, %v1167
      %v1706 = vcombine.low %v1166, %v1168
      %v1708 = vunpack.c.l.s4 1935823168
      %v1709 = vunpack.c.0.s8 %v1708
      %v1710 = vlaneseq
      %v1711 = vshrl.u32 %v1710, 7
      %v1712 = vsub.s32 %v1709, %v1711
      %v1713 = vrot.slane %v1705, %v1712
      %v1715 = vunpack.c.l.s4 1935823168
      %v1716 = vunpack.c.0.s8 %v1715
      %v1717 = vlaneseq
      %v1718 = vshrl.u32 %v1717, 7
      %v1719 = vsub.s32 %v1716, %v1718
      %v1720 = vrot.slane %v1706, %v1719
      %v1721 = vcombine.low %v1713, %v1720
      %v1723 = vunpack.c.l.s4 1935823168
      %v1724 = vunpack.c.0.s8 %v1723
      %v1725 = vlaneseq
      %v1726 = vshrl.u32 %v1725, 7
      %v1727 = vsub.s32 %v1724, %v1726
      %v1728 = vrot.slane %v1721, %v1727
      %v1729 = vcombine.low %v1314, %v1318
      %v1730 = vcombine.low %v1316, %v1320
      %v1732 = vunpack.c.l.s4 1935823168
      %v1733 = vunpack.c.0.s8 %v1732
      %v1734 = vlaneseq
      %v1735 = vshrl.u32 %v1734, 7
      %v1736 = vsub.s32 %v1733, %v1735
      %v1737 = vrot.slane %v1729, %v1736
      %v1739 = vunpack.c.l.s4 1935823168
      %v1740 = vunpack.c.0.s8 %v1739
      %v1741 = vlaneseq
      %v1742 = vshrl.u32 %v1741, 7
      %v1743 = vsub.s32 %v1740, %v1742
      %v1744 = vrot.slane %v1730, %v1743
      %v1745 = vcombine.low %v1737, %v1744
      %v1747 = vunpack.c.l.s4 1935823168
      %v1748 = vunpack.c.0.s8 %v1747
      %v1749 = vlaneseq
      %v1750 = vshrl.u32 %v1749, 7
      %v1751 = vsub.s32 %v1748, %v1750
      %v1752 = vrot.slane %v1745, %v1751
      %v1753 = vcombine.low %v1322, %v1326
      %v1754 = vcombine.low %v1324, %v1328
      %v1756 = vunpack.c.l.s4 1935823168
      %v1757 = vunpack.c.0.s8 %v1756
      %v1758 = vlaneseq
      %v1759 = vshrl.u32 %v1758, 7
      %v1760 = vsub.s32 %v1757, %v1759
      %v1761 = vrot.slane %v1753, %v1760
      %v1763 = vunpack.c.l.s4 1935823168
      %v1764 = vunpack.c.0.s8 %v1763
      %v1765 = vlaneseq
      %v1766 = vshrl.u32 %v1765, 7
      %v1767 = vsub.s32 %v1764, %v1766
      %v1768 = vrot.slane %v1754, %v1767
      %v1769 = vcombine.low %v1761, %v1768
      %v1771 = vunpack.c.l.s4 1935823168
      %v1772 = vunpack.c.0.s8 %v1771
      %v1773 = vlaneseq
      %v1774 = vshrl.u32 %v1773, 7
      %v1775 = vsub.s32 %v1772, %v1774
      %v1776 = vrot.slane %v1769, %v1775
      %v1777 = vcombine.low %v1169, %v1171
      %v1778 = vcombine.low %v1170, %v1172
      %v1780 = vunpack.c.l.s4 1935823168
      %v1781 = vunpack.c.0.s8 %v1780
      %v1782 = vlaneseq
      %v1783 = vshrl.u32 %v1782, 7
      %v1784 = vsub.s32 %v1781, %v1783
      %v1785 = vrot.slane %v1777, %v1784
      %v1787 = vunpack.c.l.s4 1935823168
      %v1788 = vunpack.c.0.s8 %v1787
      %v1789 = vlaneseq
      %v1790 = vshrl.u32 %v1789, 7
      %v1791 = vsub.s32 %v1788, %v1790
      %v1792 = vrot.slane %v1778, %v1791
      %v1793 = vcombine.low %v1785, %v1792
      %v1795 = vunpack.c.l.s4 1935823168
      %v1796 = vunpack.c.0.s8 %v1795
      %v1797 = vlaneseq
      %v1798 = vshrl.u32 %v1797, 7
      %v1799 = vsub.s32 %v1796, %v1798
      %v1800 = vrot.slane %v1793, %v1799
      %v1801 = vcombine.low %v1173, %v1175
      %v1802 = vcombine.low %v1174, %v1176
      %v1804 = vunpack.c.l.s4 1935823168
      %v1805 = vunpack.c.0.s8 %v1804
      %v1806 = vlaneseq
      %v1807 = vshrl.u32 %v1806, 7
      %v1808 = vsub.s32 %v1805, %v1807
      %v1809 = vrot.slane %v1801, %v1808
      %v1811 = vunpack.c.l.s4 1935823168
      %v1812 = vunpack.c.0.s8 %v1811
      %v1813 = vlaneseq
      %v1814 = vshrl.u32 %v1813, 7
      %v1815 = vsub.s32 %v1812, %v1814
      %v1816 = vrot.slane %v1802, %v1815
      %v1817 = vcombine.low %v1809, %v1816
      %v1819 = vunpack.c.l.s4 1935823168
      %v1820 = vunpack.c.0.s8 %v1819
      %v1821 = vlaneseq
      %v1822 = vshrl.u32 %v1821, 7
      %v1823 = vsub.s32 %v1820, %v1822
      %v1824 = vrot.slane %v1817, %v1823
      %v1825 = vcombine.low %v1330, %v1334
      %v1826 = vcombine.low %v1332, %v1336
      %v1828 = vunpack.c.l.s4 1935823168
      %v1829 = vunpack.c.0.s8 %v1828
      %v1830 = vlaneseq
      %v1831 = vshrl.u32 %v1830, 7
      %v1832 = vsub.s32 %v1829, %v1831
      %v1833 = vrot.slane %v1825, %v1832
      %v1835 = vunpack.c.l.s4 1935823168
      %v1836 = vunpack.c.0.s8 %v1835
      %v1837 = vlaneseq
      %v1838 = vshrl.u32 %v1837, 7
      %v1839 = vsub.s32 %v1836, %v1838
      %v1840 = vrot.slane %v1826, %v1839
      %v1841 = vcombine.low %v1833, %v1840
      %v1843 = vunpack.c.l.s4 1935823168
      %v1844 = vunpack.c.0.s8 %v1843
      %v1845 = vlaneseq
      %v1846 = vshrl.u32 %v1845, 7
      %v1847 = vsub.s32 %v1844, %v1846
      %v1848 = vrot.slane %v1841, %v1847
      %v1849 = vcombine.low %v1338, %v1342
      %v1850 = vcombine.low %v1340, %v1344
      %v1852 = vunpack.c.l.s4 1935823168
      %v1853 = vunpack.c.0.s8 %v1852
      %v1854 = vlaneseq
      %v1855 = vshrl.u32 %v1854, 7
      %v1856 = vsub.s32 %v1853, %v1855
      %v1857 = vrot.slane %v1849, %v1856
      %v1859 = vunpack.c.l.s4 1935823168
      %v1860 = vunpack.c.0.s8 %v1859
      %v1861 = vlaneseq
      %v1862 = vshrl.u32 %v1861, 7
      %v1863 = vsub.s32 %v1860, %v1862
      %v1864 = vrot.slane %v1850, %v1863
      %v1865 = vcombine.low %v1857, %v1864
      %v1867 = vunpack.c.l.s4 1935823168
      %v1868 = vunpack.c.0.s8 %v1867
      %v1869 = vlaneseq
      %v1870 = vshrl.u32 %v1869, 7
      %v1871 = vsub.s32 %v1868, %v1870
      %v1872 = vrot.slane %v1865, %v1871
      %v1873 = vcombine.low %v1177, %v1179
      %v1874 = vcombine.low %v1178, %v1180
      %v1876 = vunpack.c.l.s4 1935823168
      %v1877 = vunpack.c.0.s8 %v1876
      %v1878 = vlaneseq
      %v1879 = vshrl.u32 %v1878, 7
      %v1880 = vsub.s32 %v1877, %v1879
      %v1881 = vrot.slane %v1873, %v1880
      %v1883 = vunpack.c.l.s4 1935823168
      %v1884 = vunpack.c.0.s8 %v1883
      %v1885 = vlaneseq
      %v1886 = vshrl.u32 %v1885, 7
      %v1887 = vsub.s32 %v1884, %v1886
      %v1888 = vrot.slane %v1874, %v1887
      %v1889 = vcombine.low %v1881, %v1888
      %v1891 = vunpack.c.l.s4 1935823168
      %v1892 = vunpack.c.0.s8 %v1891
      %v1893 = vlaneseq
      %v1894 = vshrl.u32 %v1893, 7
      %v1895 = vsub.s32 %v1892, %v1894
      %v1896 = vrot.slane %v1889, %v1895
      %v1897 = vcombine.low %v1181, %v1183
      %v1898 = vcombine.low %v1182, %v1184
      %v1900 = vunpack.c.l.s4 1935823168
      %v1901 = vunpack.c.0.s8 %v1900
      %v1902 = vlaneseq
      %v1903 = vshrl.u32 %v1902, 7
      %v1904 = vsub.s32 %v1901, %v1903
      %v1905 = vrot.slane %v1897, %v1904
      %v1907 = vunpack.c.l.s4 1935823168
      %v1908 = vunpack.c.0.s8 %v1907
      %v1909 = vlaneseq
      %v1910 = vshrl.u32 %v1909, 7
      %v1911 = vsub.s32 %v1908, %v1910
      %v1912 = vrot.slane %v1898, %v1911
      %v1913 = vcombine.low %v1905, %v1912
      %v1915 = vunpack.c.l.s4 1935823168
      %v1916 = vunpack.c.0.s8 %v1915
      %v1917 = vlaneseq
      %v1918 = vshrl.u32 %v1917, 7
      %v1919 = vsub.s32 %v1916, %v1918
      %v1920 = vrot.slane %v1913, %v1919
      %v1921 = vcombine.low %v1346, %v1350
      %v1922 = vcombine.low %v1348, %v1352
      %v1924 = vunpack.c.l.s4 1935823168
      %v1925 = vunpack.c.0.s8 %v1924
      %v1926 = vlaneseq
      %v1927 = vshrl.u32 %v1926, 7
      %v1928 = vsub.s32 %v1925, %v1927
      %v1929 = vrot.slane %v1921, %v1928
      %v1931 = vunpack.c.l.s4 1935823168
      %v1932 = vunpack.c.0.s8 %v1931
      %v1933 = vlaneseq
      %v1934 = vshrl.u32 %v1933, 7
      %v1935 = vsub.s32 %v1932, %v1934
      %v1936 = vrot.slane %v1922, %v1935
      %v1937 = vcombine.low %v1929, %v1936
      %v1939 = vunpack.c.l.s4 1935823168
      %v1940 = vunpack.c.0.s8 %v1939
      %v1941 = vlaneseq
      %v1942 = vshrl.u32 %v1941, 7
      %v1943 = vsub.s32 %v1940, %v1942
      %v1944 = vrot.slane %v1937, %v1943
      %v1945 = vcombine.low %v1354, %v1358
      %v1946 = vcombine.low %v1356, %v1360
      %v1948 = vunpack.c.l.s4 1935823168
      %v1949 = vunpack.c.0.s8 %v1948
      %v1950 = vlaneseq
      %v1951 = vshrl.u32 %v1950, 7
      %v1952 = vsub.s32 %v1949, %v1951
      %v1953 = vrot.slane %v1945, %v1952
      %v1955 = vunpack.c.l.s4 1935823168
      %v1956 = vunpack.c.0.s8 %v1955
      %v1957 = vlaneseq
      %v1958 = vshrl.u32 %v1957, 7
      %v1959 = vsub.s32 %v1956, %v1958
      %v1960 = vrot.slane %v1946, %v1959
      %v1961 = vcombine.low %v1953, %v1960
      %v1963 = vunpack.c.l.s4 1935823168
      %v1964 = vunpack.c.0.s8 %v1963
      %v1965 = vlaneseq
      %v1966 = vshrl.u32 %v1965, 7
      %v1967 = vsub.s32 %v1964, %v1966
      %v1968 = vrot.slane %v1961, %v1967
      %v1969 = vcombine.low %v1185, %v1187
      %v1970 = vcombine.low %v1186, %v1188
      %v1972 = vunpack.c.l.s4 1935823168
      %v1973 = vunpack.c.0.s8 %v1972
      %v1974 = vlaneseq
      %v1975 = vshrl.u32 %v1974, 7
      %v1976 = vsub.s32 %v1973, %v1975
      %v1977 = vrot.slane %v1969, %v1976
      %v1979 = vunpack.c.l.s4 1935823168
      %v1980 = vunpack.c.0.s8 %v1979
      %v1981 = vlaneseq
      %v1982 = vshrl.u32 %v1981, 7
      %v1983 = vsub.s32 %v1980, %v1982
      %v1984 = vrot.slane %v1970, %v1983
      %v1985 = vcombine.low %v1977, %v1984
      %v1987 = vunpack.c.l.s4 1935823168
      %v1988 = vunpack.c.0.s8 %v1987
      %v1989 = vlaneseq
      %v1990 = vshrl.u32 %v1989, 7
      %v1991 = vsub.s32 %v1988, %v1990
      %v1992 = vrot.slane %v1985, %v1991
      %v1993 = vcombine.low %v1189, %v1191
      %v1994 = vcombine.low %v1190, %v1192
      %v1996 = vunpack.c.l.s4 1935823168
      %v1997 = vunpack.c.0.s8 %v1996
      %v1998 = vlaneseq
      %v1999 = vshrl.u32 %v1998, 7
      %v2000 = vsub.s32 %v1997, %v1999
      %v2001 = vrot.slane %v1993, %v2000
      %v2003 = vunpack.c.l.s4 1935823168
      %v2004 = vunpack.c.0.s8 %v2003
      %v2005 = vlaneseq
      %v2006 = vshrl.u32 %v2005, 7
      %v2007 = vsub.s32 %v2004, %v2006
      %v2008 = vrot.slane %v1994, %v2007
      %v2009 = vcombine.low %v2001, %v2008
      %v2011 = vunpack.c.l.s4 1935823168
      %v2012 = vunpack.c.0.s8 %v2011
      %v2013 = vlaneseq
      %v2014 = vshrl.u32 %v2013, 7
      %v2015 = vsub.s32 %v2012, %v2014
      %v2016 = vrot.slane %v2009, %v2015
      %v2017 = vcombine.low %v1362, %v1366
      %v2018 = vcombine.low %v1364, %v1368
      %v2020 = vunpack.c.l.s4 1935823168
      %v2021 = vunpack.c.0.s8 %v2020
      %v2022 = vlaneseq
      %v2023 = vshrl.u32 %v2022, 7
      %v2024 = vsub.s32 %v2021, %v2023
      %v2025 = vrot.slane %v2017, %v2024
      %v2027 = vunpack.c.l.s4 1935823168
      %v2028 = vunpack.c.0.s8 %v2027
      %v2029 = vlaneseq
      %v2030 = vshrl.u32 %v2029, 7
      %v2031 = vsub.s32 %v2028, %v2030
      %v2032 = vrot.slane %v2018, %v2031
      %v2033 = vcombine.low %v2025, %v2032
      %v2035 = vunpack.c.l.s4 1935823168
      %v2036 = vunpack.c.0.s8 %v2035
      %v2037 = vlaneseq
      %v2038 = vshrl.u32 %v2037, 7
      %v2039 = vsub.s32 %v2036, %v2038
      %v2040 = vrot.slane %v2033, %v2039
      %v2041 = vcombine.low %v1370, %v1374
      %v2042 = vcombine.low %v1372, %v1376
      %v2044 = vunpack.c.l.s4 1935823168
      %v2045 = vunpack.c.0.s8 %v2044
      %v2046 = vlaneseq
      %v2047 = vshrl.u32 %v2046, 7
      %v2048 = vsub.s32 %v2045, %v2047
      %v2049 = vrot.slane %v2041, %v2048
      %v2051 = vunpack.c.l.s4 1935823168
      %v2052 = vunpack.c.0.s8 %v2051
      %v2053 = vlaneseq
      %v2054 = vshrl.u32 %v2053, 7
      %v2055 = vsub.s32 %v2052, %v2054
      %v2056 = vrot.slane %v2042, %v2055
      %v2057 = vcombine.low %v2049, %v2056
      %v2059 = vunpack.c.l.s4 1935823168
      %v2060 = vunpack.c.0.s8 %v2059
      %v2061 = vlaneseq
      %v2062 = vshrl.u32 %v2061, 7
      %v2063 = vsub.s32 %v2060, %v2062
      %v2064 = vrot.slane %v2057, %v2063
      %v2065 = vcombine.low %v1193, %v1195
      %v2066 = vcombine.low %v1194, %v1196
      %v2068 = vunpack.c.l.s4 1935823168
      %v2069 = vunpack.c.0.s8 %v2068
      %v2070 = vlaneseq
      %v2071 = vshrl.u32 %v2070, 7
      %v2072 = vsub.s32 %v2069, %v2071
      %v2073 = vrot.slane %v2065, %v2072
      %v2075 = vunpack.c.l.s4 1935823168
      %v2076 = vunpack.c.0.s8 %v2075
      %v2077 = vlaneseq
      %v2078 = vshrl.u32 %v2077, 7
      %v2079 = vsub.s32 %v2076, %v2078
      %v2080 = vrot.slane %v2066, %v2079
      %v2081 = vcombine.low %v2073, %v2080
      %v2083 = vunpack.c.l.s4 1935823168
      %v2084 = vunpack.c.0.s8 %v2083
      %v2085 = vlaneseq
      %v2086 = vshrl.u32 %v2085, 7
      %v2087 = vsub.s32 %v2084, %v2086
      %v2088 = vrot.slane %v2081, %v2087
      %v2089 = vcombine.low %v1197, %v1199
      %v2090 = vcombine.low %v1198, %v1200
      %v2092 = vunpack.c.l.s4 1935823168
      %v2093 = vunpack.c.0.s8 %v2092
      %v2094 = vlaneseq
      %v2095 = vshrl.u32 %v2094, 7
      %v2096 = vsub.s32 %v2093, %v2095
      %v2097 = vrot.slane %v2089, %v2096
      %v2099 = vunpack.c.l.s4 1935823168
      %v2100 = vunpack.c.0.s8 %v2099
      %v2101 = vlaneseq
      %v2102 = vshrl.u32 %v2101, 7
      %v2103 = vsub.s32 %v2100, %v2102
      %v2104 = vrot.slane %v2090, %v2103
      %v2105 = vcombine.low %v2097, %v2104
      %v2107 = vunpack.c.l.s4 1935823168
      %v2108 = vunpack.c.0.s8 %v2107
      %v2109 = vlaneseq
      %v2110 = vshrl.u32 %v2109, 7
      %v2111 = vsub.s32 %v2108, %v2110
      %v2112 = vrot.slane %v2105, %v2111
      %v2113 = vcombine.low %v1378, %v1382
      %v2114 = vcombine.low %v1380, %v1384
      %v2116 = vunpack.c.l.s4 1935823168
      %v2117 = vunpack.c.0.s8 %v2116
      %v2118 = vlaneseq
      %v2119 = vshrl.u32 %v2118, 7
      %v2120 = vsub.s32 %v2117, %v2119
      %v2121 = vrot.slane %v2113, %v2120
      %v2123 = vunpack.c.l.s4 1935823168
      %v2124 = vunpack.c.0.s8 %v2123
      %v2125 = vlaneseq
      %v2126 = vshrl.u32 %v2125, 7
      %v2127 = vsub.s32 %v2124, %v2126
      %v2128 = vrot.slane %v2114, %v2127
      %v2129 = vcombine.low %v2121, %v2128
      %v2131 = vunpack.c.l.s4 1935823168
      %v2132 = vunpack.c.0.s8 %v2131
      %v2133 = vlaneseq
      %v2134 = vshrl.u32 %v2133, 7
      %v2135 = vsub.s32 %v2132, %v2134
      %v2136 = vrot.slane %v2129, %v2135
      %v2137 = vcombine.low %v1386, %v1390
      %v2138 = vcombine.low %v1388, %v1392
      %v2140 = vunpack.c.l.s4 1935823168
      %v2141 = vunpack.c.0.s8 %v2140
      %v2142 = vlaneseq
      %v2143 = vshrl.u32 %v2142, 7
      %v2144 = vsub.s32 %v2141, %v2143
      %v2145 = vrot.slane %v2137, %v2144
      %v2147 = vunpack.c.l.s4 1935823168
      %v2148 = vunpack.c.0.s8 %v2147
      %v2149 = vlaneseq
      %v2150 = vshrl.u32 %v2149, 7
      %v2151 = vsub.s32 %v2148, %v2150
      %v2152 = vrot.slane %v2138, %v2151
      %v2153 = vcombine.low %v2145, %v2152
      %v2155 = vunpack.c.l.s4 1935823168
      %v2156 = vunpack.c.0.s8 %v2155
      %v2157 = vlaneseq
      %v2158 = vshrl.u32 %v2157, 7
      %v2159 = vsub.s32 %v2156, %v2158
      %v2160 = vrot.slane %v2153, %v2159
      %vm2193 = vcmask 27648
      %2194 = vst.msk [vmem:[%s170] sm:$0xf] %vm2193, %v1416
      %2195 = vst.msk [vmem:[%s170 + $0x4] sm:$0xf] %vm2193, %v1440
      %2196 = vst.msk [vmem:[%s170 + $0x8] sm:$0xf] %vm2193, %v1464
      %2197 = vst.msk [vmem:[%s170 + $0xc] sm:$0xf] %vm2193, %v1488
      %2198 = vst.msk [vmem:[%s170 + $0x10] sm:$0xf] %vm2193, %v1512
      %2199 = vst.msk [vmem:[%s170 + $0x14] sm:$0xf] %vm2193, %v1536
      %2200 = vst.msk [vmem:[%s170 + $0x18] sm:$0xf] %vm2193, %v1560
      %2201 = vst.msk [vmem:[%s170 + $0x1c] sm:$0xf] %vm2193, %v1584
      %2202 = vst.msk [vmem:[%s170 + $0x20] sm:$0xf] %vm2193, %v1608
      %2203 = vst.msk [vmem:[%s170 + $0x24] sm:$0xf] %vm2193, %v1632
      %2204 = vst.msk [vmem:[%s170 + $0x28] sm:$0xf] %vm2193, %v1656
      %2205 = vst.msk [vmem:[%s170 + $0x2c] sm:$0xf] %vm2193, %v1680
      %2206 = vst.msk [vmem:[%s170 + $0x30] sm:$0xf] %vm2193, %v1704
      %2207 = vst.msk [vmem:[%s170 + $0x34] sm:$0xf] %vm2193, %v1728
      %2208 = vst.msk [vmem:[%s170 + $0x38] sm:$0xf] %vm2193, %v1752
      %2209 = vst.msk [vmem:[%s170 + $0x3c] sm:$0xf] %vm2193, %v1776
      %2210 = vst.msk [vmem:[%s170 + $0x40] sm:$0xf] %vm2193, %v1800
      %2211 = vst.msk [vmem:[%s170 + $0x44] sm:$0xf] %vm2193, %v1824
      %2212 = vst.msk [vmem:[%s170 + $0x48] sm:$0xf] %vm2193, %v1848
      %2213 = vst.msk [vmem:[%s170 + $0x4c] sm:$0xf] %vm2193, %v1872
      %2214 = vst.msk [vmem:[%s170 + $0x50] sm:$0xf] %vm2193, %v1896
      %2215 = vst.msk [vmem:[%s170 + $0x54] sm:$0xf] %vm2193, %v1920
      %2216 = vst.msk [vmem:[%s170 + $0x58] sm:$0xf] %vm2193, %v1944
      %2217 = vst.msk [vmem:[%s170 + $0x5c] sm:$0xf] %vm2193, %v1968
      %2218 = vst.msk [vmem:[%s170 + $0x60] sm:$0xf] %vm2193, %v1992
      %2219 = vst.msk [vmem:[%s170 + $0x64] sm:$0xf] %vm2193, %v2016
      %2220 = vst.msk [vmem:[%s170 + $0x68] sm:$0xf] %vm2193, %v2040
      %2221 = vst.msk [vmem:[%s170 + $0x6c] sm:$0xf] %vm2193, %v2064
      %2222 = vst.msk [vmem:[%s170 + $0x70] sm:$0xf] %vm2193, %v2088
      %2223 = vst.msk [vmem:[%s170 + $0x74] sm:$0xf] %vm2193, %v2112
      %2224 = vst.msk [vmem:[%s170 + $0x78] sm:$0xf] %vm2193, %v2136
      %2225 = vst.msk [vmem:[%s170 + $0x7c] sm:$0xf] %vm2193, %v2160
      %p2226 = scmp.lt.s32.totalorder %s14, 1
      %s2227 = scalar_select %p2226, %s14, 1
      %s2228 = smul.addr %s2227, 32
      %s2229 = smul.addr %s2228, 4
      %s2230 = scalar_lea.vmem %s3, %s2229
      // Predicated region
      $region33: #{tpu_custom_call.1} parent=31 // pred_check
        %p2231 = pneg %p100
      $region34: #{tpu_custom_call.1} parent=31 // pred_check_branch
        %2233 = sbr.rel (%p2231) target = $region36
      $region35: #{tpu_custom_call.1} parent=31 // pred_region
        _
      $region36: #{tpu_custom_call.1} parent=31 // pred_fallthru
        _
    $region32: #{tpu_custom_call.1} parent=5 // pred_fallthru
      _
    %p2234 = scmp.le.s32.totalorder 2, %s9
    // Predicated region
    $region37: #{tpu_custom_call.1} parent=5 // pred_check
      %p2235 = pneg %p2234
    $region38: #{tpu_custom_call.1} parent=5 // pred_check_branch
      %2237 = sbr.rel (%p2235) target = $region40
    $region39: #{tpu_custom_call.1} parent=5 // pred_region
      %s2238 = ssub.s32 %s9, 2
      // Predicated region
      $region41: #{tpu_custom_call.1} parent=39 // pred_check
        %p2239 = pneg %p106
      $region42: #{tpu_custom_call.1} parent=39 // pred_check_branch
        %2241 = sbr.rel (%p2239) target = $region44
      $region43: #{tpu_custom_call.1} parent=39 // pred_region
        %p2242 = scmp.lt.s32.totalorder %s15, 1
        %s2243 = scalar_select %p2242, %s15, 1
        %s2244 = smul.addr %s2243, 32
        %s2245 = smul.addr %s2244, 4
        %s2246 = scalar_lea.vmem %s3, %s2245
      $region44: #{tpu_custom_call.1} parent=39 // pred_fallthru
        _
    $region40: #{tpu_custom_call.1} parent=5 // pred_fallthru
      _
  $region6: #{tpu_custom_call.1} parent=0 // loop_footer
    %s13 = sadd.s32 1, %s9
  $region7: #{tpu_custom_call.1} parent=0 // loop_footer_branch
    %8 = sbr.rel target = $region3
  $region8: #{tpu_custom_call.1} parent=0 // loop_exit
    _

</llo_original>
